<compile_context>
chip_gen: v7x
topology: tpu7x:2x2x1
jax: 0.10.0
libtpu: 0.0.40
codegen_flags: <defaults>
</compile_context>

<pallas_src>
import functools
import math

import jax
import jax.numpy as jnp
from jax.experimental import pallas as pl
from jax.experimental.pallas import tpu as pltpu

_GATE_PAD = 128     # lane-dense padding for gating logits / classifier heads
_NEG_INF = -1e30    # fused-bias mask value for the padded gate lanes


# ----------------------------------------------------------------------------
# Fused dual-tower kernel (single step, everything resident in VMEM).
# ----------------------------------------------------------------------------
def dual_tower_kernel(
    # image-tower inputs
    patches_ref, iew_ref, ieb_ref, imw_ref, imb_ref,
    ipw_ref, ipb_ref, icw_ref, icb_ref,
    # text-tower inputs
    emb_ref, mask_ref, tmw_ref, tmb_ref, tpw_ref, tpb_ref, tcw_ref, tcb_ref,
    # outputs
    img_feat_ref, txt_feat_ref, img_cls_ref, txt_cls_ref, eo_ref, gate_ref,
    *, batch, num_patches, seq_len, hidden, num_experts):

  eh = num_experts * hidden

  def moe(x, layer, w_ref, b_ref):
    # One wide bf16 MXU dot: [N,H] x [H, E*H + 128] -> experts ++ gate logits.
    fused = (jnp.dot(x.astype(jnp.bfloat16), w_ref[layer],
                     preferred_element_type=jnp.float32) + b_ref[layer])
    eo_flat = jnp.maximum(fused[:, :eh], 0.0)            # ReLU experts, [N,E*H]
    logits = fused[:, eh:]                               # [N,128], pads=-1e30
    logits = logits - jnp.max(logits, axis=-1, keepdims=True)
    p = jnp.exp(logits)                                  # pads -> 0
    gate = p / jnp.sum(p, axis=-1, keepdims=True)        # exact softmax, [N,128]
    # Gated combine: E unrolled lane-slice FMAs (no [N,E,H] temp, no relayout).
    combined = gate[:, 0:1] * eo_flat[:, 0:hidden]
    for e in range(1, num_experts):
      combined = combined + gate[:, e:e + 1] * eo_flat[:, e * hidden:(e + 1) * hidden]
    return combined, eo_flat, gate

  def heads(pooled, pw_ref, pb_ref, cw_ref, cb_ref):
    feat = (jnp.dot(pooled.astype(jnp.bfloat16), pw_ref[...],
                    preferred_element_type=jnp.float32) + pb_ref[...])
    cls = (jnp.dot(feat.astype(jnp.bfloat16), cw_ref[...],
                   preferred_element_type=jnp.float32) + cb_ref[...])
    return feat, cls

  # ---------------------------- image tower ---------------------------------
  x = (jnp.dot(patches_ref[...].astype(jnp.bfloat16), iew_ref[...],
               preferred_element_type=jnp.float32) + ieb_ref[...])
  out1, eo1, g1 = moe(x, 0, imw_ref, imb_ref)
  out2, eo2, g2 = moe(out1, 1, imw_ref, imb_ref)
  # mean over patches: constant mask dropped, divide by static patch count
  pooled = (jnp.sum(out2.reshape(batch, num_patches, hidden), axis=1)
            * (1.0 / num_patches))
  feat, cls = heads(pooled, ipw_ref, ipb_ref, icw_ref, icb_ref)
  img_feat_ref[...] = feat
  img_cls_ref[...] = cls
  eo_ref[0] = eo1.astype(eo_ref.dtype)                   # bf16 HBM writeback
  eo_ref[1] = eo2.astype(eo_ref.dtype)
  gate_ref[0] = g1                                       # lane-dense [N,128]
  gate_ref[1] = g2

  # ---------------------------- text tower ----------------------------------
  xt = emb_ref[...]
  t1, _, _ = moe(xt, 0, tmw_ref, tmb_ref)
  t2, _, _ = moe(t1, 1, tmw_ref, tmb_ref)
  m = mask_ref[...][:, :, None]
  xs = t2.reshape(batch, seq_len, hidden)
  s = jnp.sum(xs * m, axis=1)
  c = jnp.sum(m, axis=1)
  pooled_t = s / jnp.maximum(c, 1.0)                     # exact masked mean
  tfeat, tcls = heads(pooled_t, tpw_ref, tpb_ref, tcw_ref, tcb_ref)
  txt_feat_ref[...] = tfeat
  txt_cls_ref[...] = tcls
  # text tower exports no expert/gating outputs (caller discards them).


# ----------------------------------------------------------------------------
# Forward pass (host glue: patchify, embedding gather, output un-padding)
# ----------------------------------------------------------------------------
def dual_tower_forward(params, images, input_ids, attention_mask, *,
                       patch, num_classes):
  b, c, hh, ww = images.shape
  ph, pw = hh // patch, ww // patch
  num_patches = ph * pw
  n_img = b * num_patches

  patches = images.reshape(b, c, ph, patch, pw, patch)
  patches = patches.transpose(0, 2, 4, 1, 3, 5).reshape(n_img, c * patch * patch)

  emb = jnp.take(params["txt_embed"], input_ids, axis=0)        # gather glue
  seq = input_ids.shape[1]
  hidden = emb.shape[-1]
  emb2d = emb.reshape(b * seq, hidden)
  mask = attention_mask.astype(jnp.float32)

  eh = params["img_moe_w"].shape[-1] - _GATE_PAD                # E*H
  num_experts = eh // hidden
  out_dim = params["img_proj_w"].shape[1]
  cls_pad = params["img_cls_w"].shape[1]

  inputs = (
      patches,
      params["img_embed_w"], params["img_embed_b"],
      params["img_moe_w"], params["img_moe_b"],
      params["img_proj_w"], params["img_proj_b"],
      params["img_cls_w"], params["img_cls_b"],
      emb2d, mask,
      params["txt_moe_w"], params["txt_moe_b"],
      params["txt_proj_w"], params["txt_proj_b"],
      params["txt_cls_w"], params["txt_cls_b"],
  )

  out_shapes = (
      jax.ShapeDtypeStruct((b, out_dim), jnp.float32),          # image features
      jax.ShapeDtypeStruct((b, out_dim), jnp.float32),          # text features
      jax.ShapeDtypeStruct((b, cls_pad), jnp.float32),          # image cls (pad)
      jax.ShapeDtypeStruct((b, cls_pad), jnp.float32),          # text cls (pad)
      jax.ShapeDtypeStruct((2, n_img, eh), jnp.bfloat16),       # expert outputs
      jax.ShapeDtypeStruct((2, n_img, _GATE_PAD), jnp.float32), # gating (pad)
  )

  vmem_spec = pl.BlockSpec(memory_space=pltpu.MemorySpace.VMEM)

  # Explicit VMEM limit from the actual footprint (with headroom), capped so it
  # stays well under v7x's 64 MiB physical VMEM.
  in_bytes = sum(int(a.size) * a.dtype.itemsize for a in inputs)
  out_bytes = sum(math.prod(s.shape) * jnp.dtype(s.dtype).itemsize
                  for s in out_shapes)
  vmem_limit = int(min(48 * 1024 * 1024,
                       max(8 * 1024 * 1024, 4 * (in_bytes + out_bytes))))

  kern = functools.partial(
      dual_tower_kernel, batch=b, num_patches=num_patches, seq_len=seq,
      hidden=hidden, num_experts=num_experts)

  (img_feat, txt_feat, img_cls_p, txt_cls_p, eo_slab, gate_slab) = pl.pallas_call(
      kern,
      out_shape=out_shapes,
      in_specs=[vmem_spec] * len(inputs),
      out_specs=tuple(vmem_spec for _ in out_shapes),
      compiler_params=pltpu.CompilerParams(vmem_limit_bytes=vmem_limit),
  )(*inputs)

  image_cls = img_cls_p[:, :num_classes]
  text_cls = txt_cls_p[:, :num_classes]
  eo1 = eo_slab[0].astype(jnp.float32).reshape(b, num_patches, num_experts, hidden)
  eo2 = eo_slab[1].astype(jnp.float32).reshape(b, num_patches, num_experts, hidden)
  g1 = gate_slab[0, :, :num_experts].reshape(b, num_patches, num_experts)
  g2 = gate_slab[1, :, :num_experts].reshape(b, num_patches, num_experts)

  return (img_feat, txt_feat, image_cls, text_cls, (eo1, eo2), (g1, g2))


# ----------------------------------------------------------------------------
# Deterministic parameter init.
#   * Expert weights + gating weights are fused per layer into one bf16 matrix
#     [H, E*H + 128]; the padded gate lanes get zero weights and a -1e30 bias
#     so the in-kernel softmax ignores them.
#   * Classifier heads are pre-padded to 128 lanes (lane-dense stores).
#   * All matmul weights are bf16 (MXU-native); biases/embedding table f32.
# ----------------------------------------------------------------------------
def init_params(key, *, vocab_size, patch_dim, hidden, num_experts,
                output_dim, num_classes):
  assert num_classes <= _GATE_PAD and num_experts <= _GATE_PAD
  ks = iter(jax.random.split(key, 64))

  def nrm(shape, scale=0.05, dtype=jnp.float32):
    return (scale * jax.random.normal(next(ks), shape)).astype(dtype)

  def moe_fused():
    ws, bs = [], []
    for _ in range(2):                                    # two MoE layers
      we = nrm((num_experts, hidden, hidden))             # per-expert [E,H,H]
      we_flat = we.transpose(1, 0, 2).reshape(hidden, num_experts * hidden)
      wg = nrm((hidden, num_experts))
      wg_pad = jnp.zeros((hidden, _GATE_PAD), jnp.float32)
      wg_pad = wg_pad.at[:, :num_experts].set(wg)
      ws.append(jnp.concatenate([we_flat, wg_pad], axis=-1).astype(jnp.bfloat16))
      be = jnp.zeros((1, num_experts * hidden), jnp.float32)
      bg = jnp.full((1, _GATE_PAD), _NEG_INF, jnp.float32)
      bg = bg.at[:, :num_experts].set(0.0)
      bs.append(jnp.concatenate([be, bg], axis=-1))
    return jnp.stack(ws), jnp.stack(bs)                   # [2,H,E*H+128], [2,1,E*H+128]

  img_moe_w, img_moe_b = moe_fused()
  txt_moe_w, txt_moe_b = moe_fused()

  def cls_head():
    w = jnp.zeros((output_dim, _GATE_PAD), jnp.float32)
    w = w.at[:, :num_classes].set(nrm((output_dim, num_classes)))
    return w.astype(jnp.bfloat16), jnp.zeros((1, _GATE_PAD), jnp.float32)

  img_cls_w, img_cls_b = cls_head()
  txt_cls_w, txt_cls_b = cls_head()

  return {
      "img_embed_w": nrm((patch_dim, hidden), dtype=jnp.bfloat16),
      "img_embed_b": jnp.zeros((1, hidden), jnp.float32),
      "img_moe_w": img_moe_w, "img_moe_b": img_moe_b,
      "img_proj_w": nrm((hidden, output_dim), dtype=jnp.bfloat16),
      "img_proj_b": jnp.zeros((1, output_dim), jnp.float32),
      "img_cls_w": img_cls_w, "img_cls_b": img_cls_b,
      "txt_embed": nrm((vocab_size, hidden)),
      "txt_moe_w": txt_moe_w, "txt_moe_b": txt_moe_b,
      "txt_proj_w": nrm((hidden, output_dim), dtype=jnp.bfloat16),
      "txt_proj_b": jnp.zeros((1, output_dim), jnp.float32),
      "txt_cls_w": txt_cls_w, "txt_cls_b": txt_cls_b,
  }


if __name__ == "__main__":
  B, C, IMG, PATCH = 2, 3, 16, 8            # -> 4 patches / image
  S, VOCAB = 8, 32
  HIDDEN, OUTPUT_DIM, NUM_EXPERTS, NUM_CLASSES = 128, 128, 4, 10

  key = jax.random.PRNGKey(0)
  kp, ki, kt = jax.random.split(key, 3)

  params = init_params(
      kp, vocab_size=VOCAB, patch_dim=C * PATCH * PATCH, hidden=HIDDEN,
      num_experts=NUM_EXPERTS, output_dim=OUTPUT_DIM, num_classes=NUM_CLASSES)

  images = jax.random.normal(ki, (B, C, IMG, IMG), jnp.float32)      # NCHW
  input_ids = jax.random.randint(kt, (B, S), 0, VOCAB, dtype=jnp.int32)
  attention_mask = jnp.ones((B, S), jnp.int32).at[:, S - 2:].set(0)

  fwd = jax.jit(functools.partial(dual_tower_forward, patch=PATCH,
                                  num_classes=NUM_CLASSES))
  out = fwd(params, images, input_ids, attention_mask)
  out = jax.block_until_ready(out)

  img_feat, txt_feat, img_cls, txt_cls, (eo1, eo2), (g1, g2) = out
  NP = (IMG // PATCH) ** 2
  assert img_feat.shape == (B, OUTPUT_DIM) and txt_feat.shape == (B, OUTPUT_DIM)
  assert img_cls.shape == (B, NUM_CLASSES) and txt_cls.shape == (B, NUM_CLASSES)
  assert eo1.shape == (B, NP, NUM_EXPERTS, HIDDEN) and eo2.shape == eo1.shape
  assert g1.shape == (B, NP, NUM_EXPERTS) and g2.shape == g1.shape
  for a in (img_feat, txt_feat, img_cls, txt_cls, eo1, eo2, g1, g2):
    assert bool(jnp.all(jnp.isfinite(a)))
  print("KERNEL_OK")
</pallas_src>

<mosaic_0001>
module attributes {stable_mosaic.version = 11 : i64} {
  func.func @dual_tower_kernel(%arg0: memref<8x192xf32, #tpu.memory_space<vmem>>, %arg1: memref<192x128xbf16, #tpu.memory_space<vmem>>, %arg2: memref<1x128xf32, #tpu.memory_space<vmem>>, %arg3: memref<2x128x640xbf16, #tpu.memory_space<vmem>>, %arg4: memref<2x1x640xf32, #tpu.memory_space<vmem>>, %arg5: memref<128x128xbf16, #tpu.memory_space<vmem>>, %arg6: memref<1x128xf32, #tpu.memory_space<vmem>>, %arg7: memref<128x128xbf16, #tpu.memory_space<vmem>>, %arg8: memref<1x128xf32, #tpu.memory_space<vmem>>, %arg9: memref<16x128xf32, #tpu.memory_space<vmem>>, %arg10: memref<2x8xf32, #tpu.memory_space<vmem>>, %arg11: memref<2x128x640xbf16, #tpu.memory_space<vmem>>, %arg12: memref<2x1x640xf32, #tpu.memory_space<vmem>>, %arg13: memref<128x128xbf16, #tpu.memory_space<vmem>>, %arg14: memref<1x128xf32, #tpu.memory_space<vmem>>, %arg15: memref<128x128xbf16, #tpu.memory_space<vmem>>, %arg16: memref<1x128xf32, #tpu.memory_space<vmem>>, %arg17: memref<2x128xf32, #tpu.memory_space<vmem>>, %arg18: memref<2x128xf32, #tpu.memory_space<vmem>>, %arg19: memref<2x128xf32, #tpu.memory_space<vmem>>, %arg20: memref<2x128xf32, #tpu.memory_space<vmem>>, %arg21: memref<2x8x512xbf16, #tpu.memory_space<vmem>>, %arg22: memref<2x8x128xf32, #tpu.memory_space<vmem>>) attributes {dimension_semantics = [], scalar_prefetch = 0 : i64, scratch_operands = 0 : i64, tpu.core_type = #tpu.core_type<tc>} {
    %c0 = arith.constant 0 : index
    %c0_0 = arith.constant 0 : index
    %0 = vector.load %arg0[%c0, %c0_0] : memref<8x192xf32, #tpu.memory_space<vmem>>, vector<8x192xf32>
    %1 = arith.truncf %0 : vector<8x192xf32> to vector<8x192xbf16>
    %c0_1 = arith.constant 0 : index
    %c0_2 = arith.constant 0 : index
    %2 = vector.load %arg1[%c0_1, %c0_2] : memref<192x128xbf16, #tpu.memory_space<vmem>>, vector<192x128xbf16>
    %cst = arith.constant dense<0.000000e+00> : vector<8x128xf32>
    %3 = tpu.matmul %1, %2, %cst {dimension_numbers = #tpu.dot_dimension_numbers<[1], [0], [0], [1], [0, 0, 1, 1], [], []>} : vector<8x192xbf16>, vector<192x128xbf16>, vector<8x128xf32> -> vector<8x128xf32>
    %c0_3 = arith.constant 0 : index
    %c0_4 = arith.constant 0 : index
    %4 = vector.load %arg2[%c0_3, %c0_4] : memref<1x128xf32, #tpu.memory_space<vmem>>, vector<1x128xf32>
    %5 = vector.broadcast %4 : vector<1x128xf32> to vector<8x128xf32>
    %6 = arith.addf %3, %5 : vector<8x128xf32>
    %7 = arith.truncf %6 : vector<8x128xf32> to vector<8x128xbf16>
    %c0_5 = arith.constant 0 : index
    %c0_6 = arith.constant 0 : index
    %c0_7 = arith.constant 0 : index
    %8 = vector.load %arg3[%c0_5, %c0_6, %c0_7] : memref<2x128x640xbf16, #tpu.memory_space<vmem>>, vector<1x128x640xbf16>
    %9 = vector.shape_cast %8 : vector<1x128x640xbf16> to vector<128x640xbf16>
    %cst_8 = arith.constant dense<0.000000e+00> : vector<8x640xf32>
    %10 = tpu.matmul %7, %9, %cst_8 {dimension_numbers = #tpu.dot_dimension_numbers<[1], [0], [0], [1], [0, 0, 1, 1], [], []>} : vector<8x128xbf16>, vector<128x640xbf16>, vector<8x640xf32> -> vector<8x640xf32>
    %c0_9 = arith.constant 0 : index
    %c0_10 = arith.constant 0 : index
    %c0_11 = arith.constant 0 : index
    %11 = vector.load %arg4[%c0_9, %c0_10, %c0_11] : memref<2x1x640xf32, #tpu.memory_space<vmem>>, vector<1x1x640xf32>
    %12 = vector.shape_cast %11 : vector<1x1x640xf32> to vector<1x640xf32>
    %13 = vector.broadcast %12 : vector<1x640xf32> to vector<8x640xf32>
    %14 = arith.addf %10, %13 : vector<8x640xf32>
    %15 = vector.extract_strided_slice %14 {offsets = [0, 0], sizes = [8, 512], strides = [1, 1]} : vector<8x640xf32> to vector<8x512xf32>
    %cst_12 = arith.constant 0.000000e+00 : f32
    %16 = vector.broadcast %cst_12 : f32 to vector<8x512xf32>
    %17 = arith.maximumf %15, %16 : vector<8x512xf32>
    %18 = vector.extract_strided_slice %14 {offsets = [0, 512], sizes = [8, 128], strides = [1, 1]} : vector<8x640xf32> to vector<8x128xf32>
    %cst_13 = arith.constant dense<0xFF800000> : vector<8xf32>
    %19 = vector.multi_reduction <maximumf>, %18, %cst_13 [1] : vector<8x128xf32> to vector<8xf32>
    %20 = vector.shape_cast %19 : vector<8xf32> to vector<8x1xf32>
    %21 = vector.broadcast %20 : vector<8x1xf32> to vector<8x128xf32>
    %22 = arith.subf %18, %21 : vector<8x128xf32>
    %23 = math.exp %22 : vector<8x128xf32>
    %cst_14 = arith.constant dense<0.000000e+00> : vector<8xf32>
    %24 = vector.multi_reduction <add>, %23, %cst_14 [1] : vector<8x128xf32> to vector<8xf32>
    %25 = vector.shape_cast %24 : vector<8xf32> to vector<8x1xf32>
    %26 = vector.broadcast %25 : vector<8x1xf32> to vector<8x128xf32>
    %27 = arith.divf %23, %26 : vector<8x128xf32>
    %28 = vector.extract_strided_slice %27 {offsets = [0, 0], sizes = [8, 1], strides = [1, 1]} : vector<8x128xf32> to vector<8x1xf32>
    %29 = vector.extract_strided_slice %17 {offsets = [0, 0], sizes = [8, 128], strides = [1, 1]} : vector<8x512xf32> to vector<8x128xf32>
    %30 = vector.broadcast %28 : vector<8x1xf32> to vector<8x128xf32>
    %31 = arith.mulf %30, %29 : vector<8x128xf32>
    %32 = vector.extract_strided_slice %27 {offsets = [0, 1], sizes = [8, 1], strides = [1, 1]} : vector<8x128xf32> to vector<8x1xf32>
    %33 = vector.extract_strided_slice %17 {offsets = [0, 128], sizes = [8, 128], strides = [1, 1]} : vector<8x512xf32> to vector<8x128xf32>
    %34 = vector.broadcast %32 : vector<8x1xf32> to vector<8x128xf32>
    %35 = arith.mulf %34, %33 : vector<8x128xf32>
    %36 = arith.addf %31, %35 : vector<8x128xf32>
    %37 = vector.extract_strided_slice %27 {offsets = [0, 2], sizes = [8, 1], strides = [1, 1]} : vector<8x128xf32> to vector<8x1xf32>
    %38 = vector.extract_strided_slice %17 {offsets = [0, 256], sizes = [8, 128], strides = [1, 1]} : vector<8x512xf32> to vector<8x128xf32>
    %39 = vector.broadcast %37 : vector<8x1xf32> to vector<8x128xf32>
    %40 = arith.mulf %39, %38 : vector<8x128xf32>
    %41 = arith.addf %36, %40 : vector<8x128xf32>
    %42 = vector.extract_strided_slice %27 {offsets = [0, 3], sizes = [8, 1], strides = [1, 1]} : vector<8x128xf32> to vector<8x1xf32>
    %43 = vector.extract_strided_slice %17 {offsets = [0, 384], sizes = [8, 128], strides = [1, 1]} : vector<8x512xf32> to vector<8x128xf32>
    %44 = vector.broadcast %42 : vector<8x1xf32> to vector<8x128xf32>
    %45 = arith.mulf %44, %43 : vector<8x128xf32>
    %46 = arith.addf %41, %45 : vector<8x128xf32>
    %47 = arith.truncf %46 : vector<8x128xf32> to vector<8x128xbf16>
    %c1 = arith.constant 1 : index
    %c0_15 = arith.constant 0 : index
    %c0_16 = arith.constant 0 : index
    %48 = vector.load %arg3[%c1, %c0_15, %c0_16] : memref<2x128x640xbf16, #tpu.memory_space<vmem>>, vector<1x128x640xbf16>
    %49 = vector.shape_cast %48 : vector<1x128x640xbf16> to vector<128x640xbf16>
    %cst_17 = arith.constant dense<0.000000e+00> : vector<8x640xf32>
    %50 = tpu.matmul %47, %49, %cst_17 {dimension_numbers = #tpu.dot_dimension_numbers<[1], [0], [0], [1], [0, 0, 1, 1], [], []>} : vector<8x128xbf16>, vector<128x640xbf16>, vector<8x640xf32> -> vector<8x640xf32>
    %c1_18 = arith.constant 1 : index
    %c0_19 = arith.constant 0 : index
    %c0_20 = arith.constant 0 : index
    %51 = vector.load %arg4[%c1_18, %c0_19, %c0_20] : memref<2x1x640xf32, #tpu.memory_space<vmem>>, vector<1x1x640xf32>
    %52 = vector.shape_cast %51 : vector<1x1x640xf32> to vector<1x640xf32>
    %53 = vector.broadcast %52 : vector<1x640xf32> to vector<8x640xf32>
    %54 = arith.addf %50, %53 : vector<8x640xf32>
    %55 = vector.extract_strided_slice %54 {offsets = [0, 0], sizes = [8, 512], strides = [1, 1]} : vector<8x640xf32> to vector<8x512xf32>
    %cst_21 = arith.constant 0.000000e+00 : f32
    %56 = vector.broadcast %cst_21 : f32 to vector<8x512xf32>
    %57 = arith.maximumf %55, %56 : vector<8x512xf32>
    %58 = vector.extract_strided_slice %54 {offsets = [0, 512], sizes = [8, 128], strides = [1, 1]} : vector<8x640xf32> to vector<8x128xf32>
    %cst_22 = arith.constant dense<0xFF800000> : vector<8xf32>
    %59 = vector.multi_reduction <maximumf>, %58, %cst_22 [1] : vector<8x128xf32> to vector<8xf32>
    %60 = vector.shape_cast %59 : vector<8xf32> to vector<8x1xf32>
    %61 = vector.broadcast %60 : vector<8x1xf32> to vector<8x128xf32>
    %62 = arith.subf %58, %61 : vector<8x128xf32>
    %63 = math.exp %62 : vector<8x128xf32>
    %cst_23 = arith.constant dense<0.000000e+00> : vector<8xf32>
    %64 = vector.multi_reduction <add>, %63, %cst_23 [1] : vector<8x128xf32> to vector<8xf32>
    %65 = vector.shape_cast %64 : vector<8xf32> to vector<8x1xf32>
    %66 = vector.broadcast %65 : vector<8x1xf32> to vector<8x128xf32>
    %67 = arith.divf %63, %66 : vector<8x128xf32>
    %68 = vector.extract_strided_slice %67 {offsets = [0, 0], sizes = [8, 1], strides = [1, 1]} : vector<8x128xf32> to vector<8x1xf32>
    %69 = vector.extract_strided_slice %57 {offsets = [0, 0], sizes = [8, 128], strides = [1, 1]} : vector<8x512xf32> to vector<8x128xf32>
    %70 = vector.broadcast %68 : vector<8x1xf32> to vector<8x128xf32>
    %71 = arith.mulf %70, %69 : vector<8x128xf32>
    %72 = vector.extract_strided_slice %67 {offsets = [0, 1], sizes = [8, 1], strides = [1, 1]} : vector<8x128xf32> to vector<8x1xf32>
    %73 = vector.extract_strided_slice %57 {offsets = [0, 128], sizes = [8, 128], strides = [1, 1]} : vector<8x512xf32> to vector<8x128xf32>
    %74 = vector.broadcast %72 : vector<8x1xf32> to vector<8x128xf32>
    %75 = arith.mulf %74, %73 : vector<8x128xf32>
    %76 = arith.addf %71, %75 : vector<8x128xf32>
    %77 = vector.extract_strided_slice %67 {offsets = [0, 2], sizes = [8, 1], strides = [1, 1]} : vector<8x128xf32> to vector<8x1xf32>
    %78 = vector.extract_strided_slice %57 {offsets = [0, 256], sizes = [8, 128], strides = [1, 1]} : vector<8x512xf32> to vector<8x128xf32>
    %79 = vector.broadcast %77 : vector<8x1xf32> to vector<8x128xf32>
    %80 = arith.mulf %79, %78 : vector<8x128xf32>
    %81 = arith.addf %76, %80 : vector<8x128xf32>
    %82 = vector.extract_strided_slice %67 {offsets = [0, 3], sizes = [8, 1], strides = [1, 1]} : vector<8x128xf32> to vector<8x1xf32>
    %83 = vector.extract_strided_slice %57 {offsets = [0, 384], sizes = [8, 128], strides = [1, 1]} : vector<8x512xf32> to vector<8x128xf32>
    %84 = vector.broadcast %82 : vector<8x1xf32> to vector<8x128xf32>
    %85 = arith.mulf %84, %83 : vector<8x128xf32>
    %86 = arith.addf %81, %85 : vector<8x128xf32>
    %87 = vector.shape_cast %86 : vector<8x128xf32> to vector<2x4x128xf32>
    %cst_24 = arith.constant dense<0.000000e+00> : vector<2x128xf32>
    %88 = vector.multi_reduction <add>, %87, %cst_24 [1] : vector<2x4x128xf32> to vector<2x128xf32>
    %cst_25 = arith.constant 2.500000e-01 : f32
    %89 = vector.broadcast %cst_25 : f32 to vector<2x128xf32>
    %90 = arith.mulf %88, %89 : vector<2x128xf32>
    %91 = arith.truncf %90 : vector<2x128xf32> to vector<2x128xbf16>
    %c0_26 = arith.constant 0 : index
    %c0_27 = arith.constant 0 : index
    %92 = vector.load %arg5[%c0_26, %c0_27] : memref<128x128xbf16, #tpu.memory_space<vmem>>, vector<128x128xbf16>
    %cst_28 = arith.constant dense<0.000000e+00> : vector<2x128xf32>
    %93 = tpu.matmul %91, %92, %cst_28 {dimension_numbers = #tpu.dot_dimension_numbers<[1], [0], [0], [1], [0, 0, 1, 1], [], []>} : vector<2x128xbf16>, vector<128x128xbf16>, vector<2x128xf32> -> vector<2x128xf32>
    %c0_29 = arith.constant 0 : index
    %c0_30 = arith.constant 0 : index
    %94 = vector.load %arg6[%c0_29, %c0_30] : memref<1x128xf32, #tpu.memory_space<vmem>>, vector<1x128xf32>
    %95 = vector.broadcast %94 : vector<1x128xf32> to vector<2x128xf32>
    %96 = arith.addf %93, %95 : vector<2x128xf32>
    %97 = arith.truncf %96 : vector<2x128xf32> to vector<2x128xbf16>
    %c0_31 = arith.constant 0 : index
    %c0_32 = arith.constant 0 : index
    %98 = vector.load %arg7[%c0_31, %c0_32] : memref<128x128xbf16, #tpu.memory_space<vmem>>, vector<128x128xbf16>
    %cst_33 = arith.constant dense<0.000000e+00> : vector<2x128xf32>
    %99 = tpu.matmul %97, %98, %cst_33 {dimension_numbers = #tpu.dot_dimension_numbers<[1], [0], [0], [1], [0, 0, 1, 1], [], []>} : vector<2x128xbf16>, vector<128x128xbf16>, vector<2x128xf32> -> vector<2x128xf32>
    %c0_34 = arith.constant 0 : index
    %c0_35 = arith.constant 0 : index
    %100 = vector.load %arg8[%c0_34, %c0_35] : memref<1x128xf32, #tpu.memory_space<vmem>>, vector<1x128xf32>
    %101 = vector.broadcast %100 : vector<1x128xf32> to vector<2x128xf32>
    %102 = arith.addf %99, %101 : vector<2x128xf32>
    %c0_36 = arith.constant 0 : index
    %c0_37 = arith.constant 0 : index
    %103 = vector.load %arg17[%c0_36, %c0_37] : memref<2x128xf32, #tpu.memory_space<vmem>>, vector<2x128xf32>
    tpu.vector_store %arg17[%c0_36, %c0_37], %96 {strides = array<i32>} : memref<2x128xf32, #tpu.memory_space<vmem>>, vector<2x128xf32>,
    %c0_38 = arith.constant 0 : index
    %c0_39 = arith.constant 0 : index
    %104 = vector.load %arg19[%c0_38, %c0_39] : memref<2x128xf32, #tpu.memory_space<vmem>>, vector<2x128xf32>
    tpu.vector_store %arg19[%c0_38, %c0_39], %102 {strides = array<i32>} : memref<2x128xf32, #tpu.memory_space<vmem>>, vector<2x128xf32>,
    %105 = arith.truncf %17 : vector<8x512xf32> to vector<8x512xbf16>
    %c0_40 = arith.constant 0 : index
    %c0_41 = arith.constant 0 : index
    %c0_42 = arith.constant 0 : index
    %106 = vector.load %arg21[%c0_40, %c0_41, %c0_42] : memref<2x8x512xbf16, #tpu.memory_space<vmem>>, vector<1x8x512xbf16>
    %107 = vector.shape_cast %106 : vector<1x8x512xbf16> to vector<8x512xbf16>
    %108 = vector.shape_cast %105 : vector<8x512xbf16> to vector<1x8x512xbf16>
    tpu.vector_store %arg21[%c0_40, %c0_41, %c0_42], %108 {strides = array<i32>} : memref<2x8x512xbf16, #tpu.memory_space<vmem>>, vector<1x8x512xbf16>,
    %109 = arith.truncf %57 : vector<8x512xf32> to vector<8x512xbf16>
    %c1_43 = arith.constant 1 : index
    %c0_44 = arith.constant 0 : index
    %c0_45 = arith.constant 0 : index
    %110 = vector.load %arg21[%c1_43, %c0_44, %c0_45] : memref<2x8x512xbf16, #tpu.memory_space<vmem>>, vector<1x8x512xbf16>
    %111 = vector.shape_cast %110 : vector<1x8x512xbf16> to vector<8x512xbf16>
    %112 = vector.shape_cast %109 : vector<8x512xbf16> to vector<1x8x512xbf16>
    tpu.vector_store %arg21[%c1_43, %c0_44, %c0_45], %112 {strides = array<i32>} : memref<2x8x512xbf16, #tpu.memory_space<vmem>>, vector<1x8x512xbf16>,
    %c0_46 = arith.constant 0 : index
    %c0_47 = arith.constant 0 : index
    %c0_48 = arith.constant 0 : index
    %113 = vector.load %arg22[%c0_46, %c0_47, %c0_48] : memref<2x8x128xf32, #tpu.memory_space<vmem>>, vector<1x8x128xf32>
    %114 = vector.shape_cast %113 : vector<1x8x128xf32> to vector<8x128xf32>
    %115 = vector.shape_cast %27 : vector<8x128xf32> to vector<1x8x128xf32>
    tpu.vector_store %arg22[%c0_46, %c0_47, %c0_48], %115 {strides = array<i32>} : memref<2x8x128xf32, #tpu.memory_space<vmem>>, vector<1x8x128xf32>,
    %c1_49 = arith.constant 1 : index
    %c0_50 = arith.constant 0 : index
    %c0_51 = arith.constant 0 : index
    %116 = vector.load %arg22[%c1_49, %c0_50, %c0_51] : memref<2x8x128xf32, #tpu.memory_space<vmem>>, vector<1x8x128xf32>
    %117 = vector.shape_cast %116 : vector<1x8x128xf32> to vector<8x128xf32>
    %118 = vector.shape_cast %67 : vector<8x128xf32> to vector<1x8x128xf32>
    tpu.vector_store %arg22[%c1_49, %c0_50, %c0_51], %118 {strides = array<i32>} : memref<2x8x128xf32, #tpu.memory_space<vmem>>, vector<1x8x128xf32>,
    %c0_52 = arith.constant 0 : index
    %c0_53 = arith.constant 0 : index
    %119 = vector.load %arg9[%c0_52, %c0_53] : memref<16x128xf32, #tpu.memory_space<vmem>>, vector<16x128xf32>
    %120 = arith.truncf %119 : vector<16x128xf32> to vector<16x128xbf16>
    %c0_54 = arith.constant 0 : index
    %c0_55 = arith.constant 0 : index
    %c0_56 = arith.constant 0 : index
    %121 = vector.load %arg11[%c0_54, %c0_55, %c0_56] : memref<2x128x640xbf16, #tpu.memory_space<vmem>>, vector<1x128x640xbf16>
    %122 = vector.shape_cast %121 : vector<1x128x640xbf16> to vector<128x640xbf16>
    %cst_57 = arith.constant dense<0.000000e+00> : vector<16x640xf32>
    %123 = tpu.matmul %120, %122, %cst_57 {dimension_numbers = #tpu.dot_dimension_numbers<[1], [0], [0], [1], [0, 0, 1, 1], [], []>} : vector<16x128xbf16>, vector<128x640xbf16>, vector<16x640xf32> -> vector<16x640xf32>
    %c0_58 = arith.constant 0 : index
    %c0_59 = arith.constant 0 : index
    %c0_60 = arith.constant 0 : index
    %124 = vector.load %arg12[%c0_58, %c0_59, %c0_60] : memref<2x1x640xf32, #tpu.memory_space<vmem>>, vector<1x1x640xf32>
    %125 = vector.shape_cast %124 : vector<1x1x640xf32> to vector<1x640xf32>
    %126 = vector.broadcast %125 : vector<1x640xf32> to vector<16x640xf32>
    %127 = arith.addf %123, %126 : vector<16x640xf32>
    %128 = vector.extract_strided_slice %127 {offsets = [0, 0], sizes = [16, 512], strides = [1, 1]} : vector<16x640xf32> to vector<16x512xf32>
    %cst_61 = arith.constant 0.000000e+00 : f32
    %129 = vector.broadcast %cst_61 : f32 to vector<16x512xf32>
    %130 = arith.maximumf %128, %129 : vector<16x512xf32>
    %131 = vector.extract_strided_slice %127 {offsets = [0, 512], sizes = [16, 128], strides = [1, 1]} : vector<16x640xf32> to vector<16x128xf32>
    %cst_62 = arith.constant dense<0xFF800000> : vector<16xf32>
    %132 = vector.multi_reduction <maximumf>, %131, %cst_62 [1] : vector<16x128xf32> to vector<16xf32>
    %133 = vector.shape_cast %132 : vector<16xf32> to vector<16x1xf32>
    %134 = vector.broadcast %133 : vector<16x1xf32> to vector<16x128xf32>
    %135 = arith.subf %131, %134 : vector<16x128xf32>
    %136 = math.exp %135 : vector<16x128xf32>
    %cst_63 = arith.constant dense<0.000000e+00> : vector<16xf32>
    %137 = vector.multi_reduction <add>, %136, %cst_63 [1] : vector<16x128xf32> to vector<16xf32>
    %138 = vector.shape_cast %137 : vector<16xf32> to vector<16x1xf32>
    %139 = vector.broadcast %138 : vector<16x1xf32> to vector<16x128xf32>
    %140 = arith.divf %136, %139 : vector<16x128xf32>
    %141 = vector.extract_strided_slice %140 {offsets = [0, 0], sizes = [16, 1], strides = [1, 1]} : vector<16x128xf32> to vector<16x1xf32>
    %142 = vector.extract_strided_slice %130 {offsets = [0, 0], sizes = [16, 128], strides = [1, 1]} : vector<16x512xf32> to vector<16x128xf32>
    %143 = vector.broadcast %141 : vector<16x1xf32> to vector<16x128xf32>
    %144 = arith.mulf %143, %142 : vector<16x128xf32>
    %145 = vector.extract_strided_slice %140 {offsets = [0, 1], sizes = [16, 1], strides = [1, 1]} : vector<16x128xf32> to vector<16x1xf32>
    %146 = vector.extract_strided_slice %130 {offsets = [0, 128], sizes = [16, 128], strides = [1, 1]} : vector<16x512xf32> to vector<16x128xf32>
    %147 = vector.broadcast %145 : vector<16x1xf32> to vector<16x128xf32>
    %148 = arith.mulf %147, %146 : vector<16x128xf32>
    %149 = arith.addf %144, %148 : vector<16x128xf32>
    %150 = vector.extract_strided_slice %140 {offsets = [0, 2], sizes = [16, 1], strides = [1, 1]} : vector<16x128xf32> to vector<16x1xf32>
    %151 = vector.extract_strided_slice %130 {offsets = [0, 256], sizes = [16, 128], strides = [1, 1]} : vector<16x512xf32> to vector<16x128xf32>
    %152 = vector.broadcast %150 : vector<16x1xf32> to vector<16x128xf32>
    %153 = arith.mulf %152, %151 : vector<16x128xf32>
    %154 = arith.addf %149, %153 : vector<16x128xf32>
    %155 = vector.extract_strided_slice %140 {offsets = [0, 3], sizes = [16, 1], strides = [1, 1]} : vector<16x128xf32> to vector<16x1xf32>
    %156 = vector.extract_strided_slice %130 {offsets = [0, 384], sizes = [16, 128], strides = [1, 1]} : vector<16x512xf32> to vector<16x128xf32>
    %157 = vector.broadcast %155 : vector<16x1xf32> to vector<16x128xf32>
    %158 = arith.mulf %157, %156 : vector<16x128xf32>
    %159 = arith.addf %154, %158 : vector<16x128xf32>
    %160 = arith.truncf %159 : vector<16x128xf32> to vector<16x128xbf16>
    %c1_64 = arith.constant 1 : index
    %c0_65 = arith.constant 0 : index
    %c0_66 = arith.constant 0 : index
    %161 = vector.load %arg11[%c1_64, %c0_65, %c0_66] : memref<2x128x640xbf16, #tpu.memory_space<vmem>>, vector<1x128x640xbf16>
    %162 = vector.shape_cast %161 : vector<1x128x640xbf16> to vector<128x640xbf16>
    %cst_67 = arith.constant dense<0.000000e+00> : vector<16x640xf32>
    %163 = tpu.matmul %160, %162, %cst_67 {dimension_numbers = #tpu.dot_dimension_numbers<[1], [0], [0], [1], [0, 0, 1, 1], [], []>} : vector<16x128xbf16>, vector<128x640xbf16>, vector<16x640xf32> -> vector<16x640xf32>
    %c1_68 = arith.constant 1 : index
    %c0_69 = arith.constant 0 : index
    %c0_70 = arith.constant 0 : index
    %164 = vector.load %arg12[%c1_68, %c0_69, %c0_70] : memref<2x1x640xf32, #tpu.memory_space<vmem>>, vector<1x1x640xf32>
    %165 = vector.shape_cast %164 : vector<1x1x640xf32> to vector<1x640xf32>
    %166 = vector.broadcast %165 : vector<1x640xf32> to vector<16x640xf32>
    %167 = arith.addf %163, %166 : vector<16x640xf32>
    %168 = vector.extract_strided_slice %167 {offsets = [0, 0], sizes = [16, 512], strides = [1, 1]} : vector<16x640xf32> to vector<16x512xf32>
    %cst_71 = arith.constant 0.000000e+00 : f32
    %169 = vector.broadcast %cst_71 : f32 to vector<16x512xf32>
    %170 = arith.maximumf %168, %169 : vector<16x512xf32>
    %171 = vector.extract_strided_slice %167 {offsets = [0, 512], sizes = [16, 128], strides = [1, 1]} : vector<16x640xf32> to vector<16x128xf32>
    %cst_72 = arith.constant dense<0xFF800000> : vector<16xf32>
    %172 = vector.multi_reduction <maximumf>, %171, %cst_72 [1] : vector<16x128xf32> to vector<16xf32>
    %173 = vector.shape_cast %172 : vector<16xf32> to vector<16x1xf32>
    %174 = vector.broadcast %173 : vector<16x1xf32> to vector<16x128xf32>
    %175 = arith.subf %171, %174 : vector<16x128xf32>
    %176 = math.exp %175 : vector<16x128xf32>
    %cst_73 = arith.constant dense<0.000000e+00> : vector<16xf32>
    %177 = vector.multi_reduction <add>, %176, %cst_73 [1] : vector<16x128xf32> to vector<16xf32>
    %178 = vector.shape_cast %177 : vector<16xf32> to vector<16x1xf32>
    %179 = vector.broadcast %178 : vector<16x1xf32> to vector<16x128xf32>
    %180 = arith.divf %176, %179 : vector<16x128xf32>
    %181 = vector.extract_strided_slice %180 {offsets = [0, 0], sizes = [16, 1], strides = [1, 1]} : vector<16x128xf32> to vector<16x1xf32>
    %182 = vector.extract_strided_slice %170 {offsets = [0, 0], sizes = [16, 128], strides = [1, 1]} : vector<16x512xf32> to vector<16x128xf32>
    %183 = vector.broadcast %181 : vector<16x1xf32> to vector<16x128xf32>
    %184 = arith.mulf %183, %182 : vector<16x128xf32>
    %185 = vector.extract_strided_slice %180 {offsets = [0, 1], sizes = [16, 1], strides = [1, 1]} : vector<16x128xf32> to vector<16x1xf32>
    %186 = vector.extract_strided_slice %170 {offsets = [0, 128], sizes = [16, 128], strides = [1, 1]} : vector<16x512xf32> to vector<16x128xf32>
    %187 = vector.broadcast %185 : vector<16x1xf32> to vector<16x128xf32>
    %188 = arith.mulf %187, %186 : vector<16x128xf32>
    %189 = arith.addf %184, %188 : vector<16x128xf32>
    %190 = vector.extract_strided_slice %180 {offsets = [0, 2], sizes = [16, 1], strides = [1, 1]} : vector<16x128xf32> to vector<16x1xf32>
    %191 = vector.extract_strided_slice %170 {offsets = [0, 256], sizes = [16, 128], strides = [1, 1]} : vector<16x512xf32> to vector<16x128xf32>
    %192 = vector.broadcast %190 : vector<16x1xf32> to vector<16x128xf32>
    %193 = arith.mulf %192, %191 : vector<16x128xf32>
    %194 = arith.addf %189, %193 : vector<16x128xf32>
    %195 = vector.extract_strided_slice %180 {offsets = [0, 3], sizes = [16, 1], strides = [1, 1]} : vector<16x128xf32> to vector<16x1xf32>
    %196 = vector.extract_strided_slice %170 {offsets = [0, 384], sizes = [16, 128], strides = [1, 1]} : vector<16x512xf32> to vector<16x128xf32>
    %197 = vector.broadcast %195 : vector<16x1xf32> to vector<16x128xf32>
    %198 = arith.mulf %197, %196 : vector<16x128xf32>
    %199 = arith.addf %194, %198 : vector<16x128xf32>
    %c0_74 = arith.constant 0 : index
    %c0_75 = arith.constant 0 : index
    %200 = vector.load %arg10[%c0_74, %c0_75] : memref<2x8xf32, #tpu.memory_space<vmem>>, vector<2x8xf32>
    %201 = vector.shape_cast %200 : vector<2x8xf32> to vector<2x8x1xf32>
    %202 = vector.shape_cast %199 : vector<16x128xf32> to vector<2x8x128xf32>
    %203 = vector.broadcast %201 : vector<2x8x1xf32> to vector<2x8x128xf32>
    %204 = arith.mulf %202, %203 : vector<2x8x128xf32>
    %cst_76 = arith.constant dense<0.000000e+00> : vector<2x128xf32>
    %205 = vector.multi_reduction <add>, %204, %cst_76 [1] : vector<2x8x128xf32> to vector<2x128xf32>
    %cst_77 = arith.constant dense<0.000000e+00> : vector<2x1xf32>
    %206 = vector.multi_reduction <add>, %201, %cst_77 [1] : vector<2x8x1xf32> to vector<2x1xf32>
    %cst_78 = arith.constant 1.000000e+00 : f32
    %207 = vector.broadcast %cst_78 : f32 to vector<2x1xf32>
    %208 = arith.maximumf %206, %207 : vector<2x1xf32>
    %209 = vector.broadcast %208 : vector<2x1xf32> to vector<2x128xf32>
    %210 = arith.divf %205, %209 : vector<2x128xf32>
    %211 = arith.truncf %210 : vector<2x128xf32> to vector<2x128xbf16>
    %c0_79 = arith.constant 0 : index
    %c0_80 = arith.constant 0 : index
    %212 = vector.load %arg13[%c0_79, %c0_80] : memref<128x128xbf16, #tpu.memory_space<vmem>>, vector<128x128xbf16>
    %cst_81 = arith.constant dense<0.000000e+00> : vector<2x128xf32>
    %213 = tpu.matmul %211, %212, %cst_81 {dimension_numbers = #tpu.dot_dimension_numbers<[1], [0], [0], [1], [0, 0, 1, 1], [], []>} : vector<2x128xbf16>, vector<128x128xbf16>, vector<2x128xf32> -> vector<2x128xf32>
    %c0_82 = arith.constant 0 : index
    %c0_83 = arith.constant 0 : index
    %214 = vector.load %arg14[%c0_82, %c0_83] : memref<1x128xf32, #tpu.memory_space<vmem>>, vector<1x128xf32>
    %215 = vector.broadcast %214 : vector<1x128xf32> to vector<2x128xf32>
    %216 = arith.addf %213, %215 : vector<2x128xf32>
    %217 = arith.truncf %216 : vector<2x128xf32> to vector<2x128xbf16>
    %c0_84 = arith.constant 0 : index
    %c0_85 = arith.constant 0 : index
    %218 = vector.load %arg15[%c0_84, %c0_85] : memref<128x128xbf16, #tpu.memory_space<vmem>>, vector<128x128xbf16>
    %cst_86 = arith.constant dense<0.000000e+00> : vector<2x128xf32>
    %219 = tpu.matmul %217, %218, %cst_86 {dimension_numbers = #tpu.dot_dimension_numbers<[1], [0], [0], [1], [0, 0, 1, 1], [], []>} : vector<2x128xbf16>, vector<128x128xbf16>, vector<2x128xf32> -> vector<2x128xf32>
    %c0_87 = arith.constant 0 : index
    %c0_88 = arith.constant 0 : index
    %220 = vector.load %arg16[%c0_87, %c0_88] : memref<1x128xf32, #tpu.memory_space<vmem>>, vector<1x128xf32>
    %221 = vector.broadcast %220 : vector<1x128xf32> to vector<2x128xf32>
    %222 = arith.addf %219, %221 : vector<2x128xf32>
    %c0_89 = arith.constant 0 : index
    %c0_90 = arith.constant 0 : index
    %223 = vector.load %arg18[%c0_89, %c0_90] : memref<2x128xf32, #tpu.memory_space<vmem>>, vector<2x128xf32>
    tpu.vector_store %arg18[%c0_89, %c0_90], %216 {strides = array<i32>} : memref<2x128xf32, #tpu.memory_space<vmem>>, vector<2x128xf32>,
    %c0_91 = arith.constant 0 : index
    %c0_92 = arith.constant 0 : index
    %224 = vector.load %arg20[%c0_91, %c0_92] : memref<2x128xf32, #tpu.memory_space<vmem>>, vector<2x128xf32>
    tpu.vector_store %arg20[%c0_91, %c0_92], %222 {strides = array<i32>} : memref<2x128xf32, #tpu.memory_space<vmem>>, vector<2x128xf32>,
    return
  }
}

</mosaic_0001>

<llo_original>
// kernel: dual_tower_forward.1
$region0: #{dual_tower_forward.1}
  #allocation0 [shape = 'u32[]', space=smem, size = 0x4, offset = 0x4, fixed_abs, tag = 'smem constant byte address 0x4 - core index']
  #allocation1 [shape = 'u32[144,128]{1,0:T(1,128)}', space=vmem, size = 0x12000, scoped, tag = 'internal scratch']
  %s0 = inlined_call_operand.vmem [shape: f32[8,192], index: 0, kind: input, shape index: {}]
  %s1 = inlined_call_operand.vmem [shape: bf16[192,128], index: 1, kind: input, shape index: {}]
  %s2 = inlined_call_operand.vmem [shape: f32[1,128], index: 2, kind: input, shape index: {}]
  %s3 = inlined_call_operand.vmem [shape: bf16[2,128,640], index: 3, kind: input, shape index: {}]
  %s4 = inlined_call_operand.vmem [shape: f32[2,1,640], index: 4, kind: input, shape index: {}]
  %s5 = inlined_call_operand.vmem [shape: bf16[128,128], index: 5, kind: input, shape index: {}]
  %s6 = inlined_call_operand.vmem [shape: f32[1,128], index: 6, kind: input, shape index: {}]
  %s7 = inlined_call_operand.vmem [shape: bf16[128,128], index: 7, kind: input, shape index: {}]
  %s8 = inlined_call_operand.vmem [shape: f32[1,128], index: 8, kind: input, shape index: {}]
  %s9 = inlined_call_operand.vmem [shape: f32[16,128], index: 9, kind: input, shape index: {}]
  %s10 = inlined_call_operand.vmem [shape: f32[2,8], index: 10, kind: input, shape index: {}]
  %s11 = inlined_call_operand.hbm [shape: bf16[2,128,640], index: 11, kind: input, shape index: {}]
  %s12 = inlined_call_operand.vmem [shape: f32[2,1,640], index: 12, kind: input, shape index: {}]
  %s13 = inlined_call_operand.vmem [shape: bf16[128,128], index: 13, kind: input, shape index: {}]
  %s14 = inlined_call_operand.vmem [shape: f32[1,128], index: 14, kind: input, shape index: {}]
  %s15 = inlined_call_operand.vmem [shape: bf16[128,128], index: 15, kind: input, shape index: {}]
  %s16 = inlined_call_operand.vmem [shape: f32[1,128], index: 16, kind: input, shape index: {}]
  %s17 = inlined_call_operand.hbm [shape: f32[2,128], index: 17, kind: output, shape index: {0}]
  %s18 = inlined_call_operand.hbm [shape: f32[2,128], index: 18, kind: output, shape index: {1}]
  %s19 = inlined_call_operand.hbm [shape: f32[2,128], index: 19, kind: output, shape index: {2}]
  %s20 = inlined_call_operand.hbm [shape: f32[2,128], index: 20, kind: output, shape index: {3}]
  %s21 = inlined_call_operand.vmem [shape: bf16[2,8,512], index: 21, kind: output, shape index: {4}]
  %s22 = inlined_call_operand.vmem [shape: f32[2,8,128], index: 22, kind: output, shape index: {5}]
  %23 = xla_tuple %s17, %s18, %s19, %s20, %s21, %s22
  %s24 = sld [smem:[#allocation0]]
  $region122: #{dual_tower_forward.1} parent=0
    _
  %s26 = ssub.s32 1, %s24
  %s27 = scalar_select 0, %s26, %s24
  $region1: #{dual_tower_forward.1} parent=0
    #allocation2 [shape = 'u8[327680]{0}', space=vmem, size = 0x50000, scoped, tag = 'input window, operand 11, single buffered']
    #allocation3 [shape = 's32[1]{0}', space=sflag, size = 0x4, scoped, tag = 'scoped memory for dual_tower_forward.1']
    #allocation4 [shape = 's32[1]{0}', space=sflag, size = 0x4, scoped, tag = 'scoped memory for dual_tower_forward.1']
    #allocation5 [shape = 'u8[1024]{0}', space=vmem, size = 0x400, scoped, tag = 'output window, operand 0, single buffered']
    #allocation6 [shape = 'u8[1024]{0}', space=vmem, size = 0x400, scoped, tag = 'output window, operand 1, single buffered']
    #allocation7 [shape = 's32[1]{0}', space=sflag, size = 0x4, scoped, tag = 'scoped memory for dual_tower_forward.1']
    #allocation8 [shape = 'u8[1024]{0}', space=vmem, size = 0x400, scoped, tag = 'output window, operand 2, single buffered']
    #allocation9 [shape = 'u8[1024]{0}', space=vmem, size = 0x400, scoped, tag = 'output window, operand 3, single buffered']
    #allocation10 [shape = 's32[1]{0}', space=sflag, size = 0x4, scoped, tag = 'scoped memory for dual_tower_forward.1']
    %28 = vsyncpa [#allocation3], 0
    %29 = vsyncpa [#allocation4], 0
    %30 = vsyncpa [#allocation7], 0
    %31 = vsyncpa [#allocation10], 0
    // Predicated region
    $region2: #{dual_tower_forward.1} parent=1 // pred_check
      _
    $region3: #{dual_tower_forward.1} parent=1 // pred_check_branch
      %33 = sbr.rel (0) target = $region5
    $region4: #{dual_tower_forward.1} parent=1 // pred_region
      _
    $region5: #{dual_tower_forward.1} parent=1 // pred_fallthru
      _
    // Predicated region
    $region6: #{dual_tower_forward.1} parent=1 // pred_check
      _
    $region7: #{dual_tower_forward.1} parent=1 // pred_check_branch
      %35 = sbr.rel (0) target = $region9
    $region8: #{dual_tower_forward.1} parent=1 // pred_region
      _
    $region9: #{dual_tower_forward.1} parent=1 // pred_fallthru
      _
    // Predicated region
    $region10: #{dual_tower_forward.1} parent=1 // pred_check
      _
    $region11: #{dual_tower_forward.1} parent=1 // pred_check_branch
      %37 = sbr.rel (0) target = $region13
    $region12: #{dual_tower_forward.1} parent=1 // pred_region
      _
    $region13: #{dual_tower_forward.1} parent=1 // pred_fallthru
      _
    // Predicated region
    $region14: #{dual_tower_forward.1} parent=1 // pred_check
      _
    $region15: #{dual_tower_forward.1} parent=1 // pred_check_branch
      %39 = sbr.rel (0) target = $region17
    $region16: #{dual_tower_forward.1} parent=1 // pred_region
      _
    $region17: #{dual_tower_forward.1} parent=1 // pred_fallthru
      _
    // Predicated region
    $region18: #{dual_tower_forward.1} parent=1 // pred_check
      _
    $region19: #{dual_tower_forward.1} parent=1 // pred_check_branch
      %41 = sbr.rel (0) target = $region21
    $region20: #{dual_tower_forward.1} parent=1 // pred_region
      _
    $region21: #{dual_tower_forward.1} parent=1 // pred_fallthru
      _
    // Predicated region
    $region22: #{dual_tower_forward.1} parent=1 // pred_check
      _
    $region23: #{dual_tower_forward.1} parent=1 // pred_check_branch
      %43 = sbr.rel (0) target = $region25
    $region24: #{dual_tower_forward.1} parent=1 // pred_region
      _
    $region25: #{dual_tower_forward.1} parent=1 // pred_fallthru
      _
    // Predicated region
    $region26: #{dual_tower_forward.1} parent=1 // pred_check
      _
    $region27: #{dual_tower_forward.1} parent=1 // pred_check_branch
      %45 = sbr.rel (0) target = $region29
    $region28: #{dual_tower_forward.1} parent=1 // pred_region
      _
    $region29: #{dual_tower_forward.1} parent=1 // pred_fallthru
      _
    // Predicated region
    $region30: #{dual_tower_forward.1} parent=1 // pred_check
      _
    $region31: #{dual_tower_forward.1} parent=1 // pred_check_branch
      %47 = sbr.rel (0) target = $region33
    $region32: #{dual_tower_forward.1} parent=1 // pred_region
      _
    $region33: #{dual_tower_forward.1} parent=1 // pred_fallthru
      _
    // Predicated region
    $region34: #{dual_tower_forward.1} parent=1 // pred_check
      _
    $region35: #{dual_tower_forward.1} parent=1 // pred_check_branch
      %49 = sbr.rel (0) target = $region37
    $region36: #{dual_tower_forward.1} parent=1 // pred_region
      _
    $region37: #{dual_tower_forward.1} parent=1 // pred_fallthru
      _
    // Predicated region
    $region38: #{dual_tower_forward.1} parent=1 // pred_check
      _
    $region39: #{dual_tower_forward.1} parent=1 // pred_check_branch
      %51 = sbr.rel (0) target = $region41
    $region40: #{dual_tower_forward.1} parent=1 // pred_region
      _
    $region41: #{dual_tower_forward.1} parent=1 // pred_fallthru
      _
    // Predicated region
    $region42: #{dual_tower_forward.1} parent=1 // pred_check
      _
    $region43: #{dual_tower_forward.1} parent=1 // pred_check_branch
      %53 = sbr.rel (0) target = $region45
    $region44: #{dual_tower_forward.1} parent=1 // pred_region
      _
    $region45: #{dual_tower_forward.1} parent=1 // pred_fallthru
      _
    // Predicated region
    $region46: #{dual_tower_forward.1} parent=1 // pred_check
      _
    $region47: #{dual_tower_forward.1} parent=1 // pred_check_branch
      %55 = sbr.rel (0) target = $region49
    $region48: #{dual_tower_forward.1} parent=1 // pred_region
      %s57 = ssub.s32 10240, 10240
      %58 = vsyncadd [#allocation3], %s57
      %s59 = sshll.u32 [#allocation2], 4
      %s60 = int_to_ptr.vmem [resolvable:$true] %s59
      %65 = dma.hbm_to_vmem [thread:$0]  %s11, 10240, %s60, [#allocation3], 320, 320, 20
    $region49: #{dual_tower_forward.1} parent=1 // pred_fallthru
      _
    // Predicated region
    $region50: #{dual_tower_forward.1} parent=1 // pred_check
      _
    $region51: #{dual_tower_forward.1} parent=1 // pred_check_branch
      %67 = sbr.rel (0) target = $region53
    $region52: #{dual_tower_forward.1} parent=1 // pred_region
      _
    $region53: #{dual_tower_forward.1} parent=1 // pred_fallthru
      _
    // Predicated region
    $region54: #{dual_tower_forward.1} parent=1 // pred_check
      _
    $region55: #{dual_tower_forward.1} parent=1 // pred_check_branch
      %69 = sbr.rel (0) target = $region57
    $region56: #{dual_tower_forward.1} parent=1 // pred_region
      _
    $region57: #{dual_tower_forward.1} parent=1 // pred_fallthru
      _
    // Predicated region
    $region58: #{dual_tower_forward.1} parent=1 // pred_check
      _
    $region59: #{dual_tower_forward.1} parent=1 // pred_check_branch
      %71 = sbr.rel (0) target = $region61
    $region60: #{dual_tower_forward.1} parent=1 // pred_region
      _
    $region61: #{dual_tower_forward.1} parent=1 // pred_fallthru
      _
    // Predicated region
    $region62: #{dual_tower_forward.1} parent=1 // pred_check
      _
    $region63: #{dual_tower_forward.1} parent=1 // pred_check_branch
      %73 = sbr.rel (0) target = $region65
    $region64: #{dual_tower_forward.1} parent=1 // pred_region
      _
    $region65: #{dual_tower_forward.1} parent=1 // pred_fallthru
      _
    // Predicated region
    $region66: #{dual_tower_forward.1} parent=1 // pred_check
      _
    $region67: #{dual_tower_forward.1} parent=1 // pred_check_branch
      %75 = sbr.rel (0) target = $region69
    $region68: #{dual_tower_forward.1} parent=1 // pred_region
      _
    $region69: #{dual_tower_forward.1} parent=1 // pred_fallthru
      _
    // Predicated region
    $region70: #{dual_tower_forward.1} parent=1 // pred_check
      _
    $region71: #{dual_tower_forward.1} parent=1 // pred_check_branch
      %77 = sbr.rel (0) target = $region73
    $region72: #{dual_tower_forward.1} parent=1 // pred_region
      %78 = dma.done [#allocation3], 10240
    $region73: #{dual_tower_forward.1} parent=1 // pred_fallthru
      _
    %v80 = vld [vmem:[%s0] sm:$0xff]
    %v81 = vld [vmem:[%s0 + $0x8] sm:$0xff]
    %v82 = vpack.c.bf16 %v80, %v80
    %v83 = vpack.c.bf16 %v81, %v81
    %v84 = vld [vmem:[%s1] sm:$0xf]
    %v85 = vld [vmem:[%s1 + $0x4] sm:$0xf]
    %v86 = vld [vmem:[%s1 + $0x8] sm:$0xf]
    %v87 = vld [vmem:[%s1 + $0xc] sm:$0xf]
    %v88 = vld [vmem:[%s1 + $0x10] sm:$0xf]
    %v89 = vld [vmem:[%s1 + $0x14] sm:$0xf]
    %v90 = vld [vmem:[%s1 + $0x18] sm:$0xf]
    %v91 = vld [vmem:[%s1 + $0x1c] sm:$0xf]
    %v92 = vld [vmem:[%s1 + $0x20] sm:$0xf]
    %v93 = vld [vmem:[%s1 + $0x24] sm:$0xf]
    %v94 = vld [vmem:[%s1 + $0x28] sm:$0xf]
    %v95 = vld [vmem:[%s1 + $0x2c] sm:$0xf]
    %v96 = vld [vmem:[%s1 + $0x30] sm:$0xf]
    %v97 = vld [vmem:[%s1 + $0x34] sm:$0xf]
    %v98 = vld [vmem:[%s1 + $0x38] sm:$0xf]
    %v99 = vld [vmem:[%s1 + $0x3c] sm:$0xf]
    %v100 = vld [vmem:[%s1 + $0x40] sm:$0xf]
    %v101 = vld [vmem:[%s1 + $0x44] sm:$0xf]
    %v102 = vld [vmem:[%s1 + $0x48] sm:$0xf]
    %v103 = vld [vmem:[%s1 + $0x4c] sm:$0xf]
    %v104 = vld [vmem:[%s1 + $0x50] sm:$0xf]
    %v105 = vld [vmem:[%s1 + $0x54] sm:$0xf]
    %v106 = vld [vmem:[%s1 + $0x58] sm:$0xf]
    %v107 = vld [vmem:[%s1 + $0x5c] sm:$0xf]
    %v108 = vld [vmem:[%s2] sm:$0x1]
    %v110 = vlaneseq
    %v111 = vshrl.u32 %v110, 7
    %v112 = vsub.s32 0, %v111
    %v113 = vrot.slane %v108, %v112
    %v139 = vunpack.c.l.b16 %v84
    %v140 = vunpack.c.l.b16 %v85
    %v141 = vunpack.c.l.b16 %v86
    %v142 = vunpack.c.l.b16 %v87
    %v143 = vunpack.c.l.b16 %v88
    %v144 = vunpack.c.l.b16 %v89
    %v145 = vunpack.c.l.b16 %v90
    %v146 = vunpack.c.l.b16 %v91
    %v147 = vunpack.c.l.b16 %v92
    %v148 = vunpack.c.l.b16 %v93
    %v149 = vunpack.c.l.b16 %v94
    %v150 = vunpack.c.l.b16 %v95
    %v151 = vunpack.c.l.b16 %v96
    %v152 = vunpack.c.l.b16 %v97
    %v153 = vunpack.c.l.b16 %v98
    %v154 = vunpack.c.l.b16 %v99
    %v155 = vunpack.c.l.b16 %v100
    %v156 = vunpack.c.l.b16 %v101
    %v157 = vunpack.c.l.b16 %v102
    %v158 = vunpack.c.l.b16 %v103
    %v159 = vunpack.c.l.b16 %v104
    %v160 = vunpack.c.l.b16 %v105
    %v161 = vunpack.c.l.b16 %v106
    %v162 = vunpack.c.l.b16 %v107
    %v163 = vpack.c.b16 %v140, %v139
    %v164 = vpack.c.b16 %v142, %v141
    %v165 = vpack.c.b16 %v144, %v143
    %v166 = vpack.c.b16 %v146, %v145
    %v167 = vpack.c.b16 %v148, %v147
    %v168 = vpack.c.b16 %v150, %v149
    %v169 = vpack.c.b16 %v152, %v151
    %v170 = vpack.c.b16 %v154, %v153
    %v171 = vpack.c.b16 %v156, %v155
    %v172 = vpack.c.b16 %v158, %v157
    %v173 = vpack.c.b16 %v160, %v159
    %v174 = vpack.c.b16 %v162, %v161
    %vm187 = vcmask 523264
    %v189 = vsel %vm187, %v83, 0
    %191 = vmatprep.subr.bf16.mxu0 0
    %192 = vmatpush1.bf16.msra.mxu0 %v163
    %193 = vmatprep.subr.bf16.mxu0 0
    %194 = vmatpush1.bf16.msra.mxu0 %v164
    %195 = vmatprep.subr.bf16.mxu0 0
    %196 = vmatpush1.bf16.msra.mxu0 %v165
    %197 = vmatprep.subr.bf16.mxu0 0
    %198 = vmatpush1.bf16.msra.mxu0 %v166
    %199 = vmatprep.subr.bf16.mxu0 0
    %200 = vmatpush1.bf16.msra.mxu0 %v167
    %201 = vmatprep.subr.bf16.mxu0 0
    %202 = vmatpush1.bf16.msra.mxu0 %v168
    %203 = vmatprep.subr.bf16.mxu0 0
    %204 = vmatpush1.bf16.msra.mxu0 %v169
    %205 = vmatprep.subr.bf16.mxu0 0
    %206 = vmatpush1.bf16.msra.mxu0 %v170
    %207 = vmatprep.subr.bf16.mxu0 0
    %208 = vmatpush1.bf16.msra.mxu0 %v171
    %209 = vmatprep.subr.bf16.mxu0 0
    %210 = vmatpush1.bf16.msra.mxu0 %v172
    %211 = vmatprep.subr.bf16.mxu0 0
    %212 = vmatpush1.bf16.msra.mxu0 %v173
    %213 = vmatprep.subr.bf16.mxu0 0
    %214 = vmatpush1.bf16.msra.mxu0 %v174
    %215 = vmatprep.subr.bf16.mxu0 0
    %216 = vmatpush1.bf16.msra.mxu0 0
    %217 = vmatprep.subr.bf16.mxu0 0
    %218 = vmatpush1.bf16.msra.mxu0 0
    %219 = vmatprep.subr.bf16.mxu0 0
    %220 = vmatpush1.bf16.msra.mxu0 0
    %221 = vmatprep.subr.bf16.mxu0 0
    %222 = vmatpush1.bf16.msra.mxu0 0
    %223 = vmatprep.mubr.bf16.mxu0 %v189
    %224 = vmatmul.mubr.bf16.gmra.mrb[0].mxu0 %v82
    %v225 = vpop.f32.mrb[0].mxu0
    %v226 = vadd.f32 %v113, %v225
    %v227 = vpop.f32.mrb[0].mxu0
    %v228 = vpop.f32.mrb[0].mxu0
    %v229 = vpop.f32.mrb[0].mxu0
    %230 = vdwg.mxu0
    %v231 = vpack.c.bf16 %v226, %v226
    %v232 = vld [vmem:[%s3] sm:$0xff]
    %v233 = vld [vmem:[%s3 + $0x8] sm:$0xff]
    %v234 = vld [vmem:[%s3 + $0x10] sm:$0xf]
    %v235 = vld [vmem:[%s3 + $0x14] sm:$0xff]
    %v236 = vld [vmem:[%s3 + $0x1c] sm:$0xff]
    %v237 = vld [vmem:[%s3 + $0x24] sm:$0xf]
    %v238 = vld [vmem:[%s3 + $0x28] sm:$0xff]
    %v239 = vld [vmem:[%s3 + $0x30] sm:$0xff]
    %v240 = vld [vmem:[%s3 + $0x38] sm:$0xf]
    %v241 = vld [vmem:[%s3 + $0x3c] sm:$0xff]
    %v242 = vld [vmem:[%s3 + $0x44] sm:$0xff]
    %v243 = vld [vmem:[%s3 + $0x4c] sm:$0xf]
    %v244 = vld [vmem:[%s3 + $0x50] sm:$0xff]
    %v245 = vld [vmem:[%s3 + $0x58] sm:$0xff]
    %v246 = vld [vmem:[%s3 + $0x60] sm:$0xf]
    %v247 = vld [vmem:[%s3 + $0x64] sm:$0xff]
    %v248 = vld [vmem:[%s3 + $0x6c] sm:$0xff]
    %v249 = vld [vmem:[%s3 + $0x74] sm:$0xf]
    %v250 = vld [vmem:[%s3 + $0x78] sm:$0xff]
    %v251 = vld [vmem:[%s3 + $0x80] sm:$0xff]
    %v252 = vld [vmem:[%s3 + $0x88] sm:$0xf]
    %v253 = vld [vmem:[%s3 + $0x8c] sm:$0xff]
    %v254 = vld [vmem:[%s3 + $0x94] sm:$0xff]
    %v255 = vld [vmem:[%s3 + $0x9c] sm:$0xf]
    %v256 = vld [vmem:[%s3 + $0xa0] sm:$0xff]
    %v257 = vld [vmem:[%s3 + $0xa8] sm:$0xff]
    %v258 = vld [vmem:[%s3 + $0xb0] sm:$0xf]
    %v259 = vld [vmem:[%s3 + $0xb4] sm:$0xff]
    %v260 = vld [vmem:[%s3 + $0xbc] sm:$0xff]
    %v261 = vld [vmem:[%s3 + $0xc4] sm:$0xf]
    %v262 = vld [vmem:[%s3 + $0xc8] sm:$0xff]
    %v263 = vld [vmem:[%s3 + $0xd0] sm:$0xff]
    %v264 = vld [vmem:[%s3 + $0xd8] sm:$0xf]
    %v265 = vld [vmem:[%s3 + $0xdc] sm:$0xff]
    %v266 = vld [vmem:[%s3 + $0xe4] sm:$0xff]
    %v267 = vld [vmem:[%s3 + $0xec] sm:$0xf]
    %v268 = vld [vmem:[%s3 + $0xf0] sm:$0xff]
    %v269 = vld [vmem:[%s3 + $0xf8] sm:$0xff]
    %v270 = vld [vmem:[%s3 + $0x100] sm:$0xf]
    %v271 = vld [vmem:[%s3 + $0x104] sm:$0xff]
    %v272 = vld [vmem:[%s3 + $0x10c] sm:$0xff]
    %v273 = vld [vmem:[%s3 + $0x114] sm:$0xf]
    %v274 = vld [vmem:[%s3 + $0x118] sm:$0xff]
    %v275 = vld [vmem:[%s3 + $0x120] sm:$0xff]
    %v276 = vld [vmem:[%s3 + $0x128] sm:$0xf]
    %v277 = vld [vmem:[%s3 + $0x12c] sm:$0xff]
    %v278 = vld [vmem:[%s3 + $0x134] sm:$0xff]
    %v279 = vld [vmem:[%s3 + $0x13c] sm:$0xf]
    %v280 = vld [vmem:[%s4] sm:$0x1f]
    %v282 = vlaneseq
    %v283 = vshrl.u32 %v282, 7
    %v284 = vsub.s32 0, %v283
    %v285 = vrot.slane %v280, %v284
    %v286 = vlaneseq
    %v287 = vshrl.u32 %v286, 7
    %v288 = vsub.s32 1, %v287
    %v289 = vrot.slane %v280, %v288
    %v290 = vlaneseq
    %v291 = vshrl.u32 %v290, 7
    %v292 = vsub.s32 2, %v291
    %v293 = vrot.slane %v280, %v292
    %v294 = vlaneseq
    %v295 = vshrl.u32 %v294, 7
    %v296 = vsub.s32 3, %v295
    %v297 = vrot.slane %v280, %v296
    %v298 = vlaneseq
    %v299 = vshrl.u32 %v298, 7
    %v300 = vsub.s32 4, %v299
    %v301 = vrot.slane %v280, %v300
    %v355 = vunpack.c.l.b16 %v232
    %v356 = vunpack.c.h.b16 %v232
    %v357 = vunpack.c.l.b16 %v233
    %v358 = vunpack.c.h.b16 %v233
    %v359 = vunpack.c.l.b16 %v234
    %v360 = vunpack.c.l.b16 %v235
    %v361 = vunpack.c.h.b16 %v235
    %v362 = vunpack.c.l.b16 %v236
    %v363 = vunpack.c.h.b16 %v236
    %v364 = vunpack.c.l.b16 %v237
    %v365 = vunpack.c.l.b16 %v238
    %v366 = vunpack.c.h.b16 %v238
    %v367 = vunpack.c.l.b16 %v239
    %v368 = vunpack.c.h.b16 %v239
    %v369 = vunpack.c.l.b16 %v240
    %v370 = vunpack.c.l.b16 %v241
    %v371 = vunpack.c.h.b16 %v241
    %v372 = vunpack.c.l.b16 %v242
    %v373 = vunpack.c.h.b16 %v242
    %v374 = vunpack.c.l.b16 %v243
    %v375 = vunpack.c.l.b16 %v244
    %v376 = vunpack.c.h.b16 %v244
    %v377 = vunpack.c.l.b16 %v245
    %v378 = vunpack.c.h.b16 %v245
    %v379 = vunpack.c.l.b16 %v246
    %v380 = vunpack.c.l.b16 %v247
    %v381 = vunpack.c.h.b16 %v247
    %v382 = vunpack.c.l.b16 %v248
    %v383 = vunpack.c.h.b16 %v248
    %v384 = vunpack.c.l.b16 %v249
    %v385 = vunpack.c.l.b16 %v250
    %v386 = vunpack.c.h.b16 %v250
    %v387 = vunpack.c.l.b16 %v251
    %v388 = vunpack.c.h.b16 %v251
    %v389 = vunpack.c.l.b16 %v252
    %v390 = vunpack.c.l.b16 %v253
    %v391 = vunpack.c.h.b16 %v253
    %v392 = vunpack.c.l.b16 %v254
    %v393 = vunpack.c.h.b16 %v254
    %v394 = vunpack.c.l.b16 %v255
    %v395 = vunpack.c.l.b16 %v256
    %v396 = vunpack.c.h.b16 %v256
    %v397 = vunpack.c.l.b16 %v257
    %v398 = vunpack.c.h.b16 %v257
    %v399 = vunpack.c.l.b16 %v258
    %v400 = vunpack.c.l.b16 %v259
    %v401 = vunpack.c.h.b16 %v259
    %v402 = vunpack.c.l.b16 %v260
    %v403 = vunpack.c.h.b16 %v260
    %v404 = vunpack.c.l.b16 %v261
    %v405 = vunpack.c.l.b16 %v262
    %v406 = vunpack.c.h.b16 %v262
    %v407 = vunpack.c.l.b16 %v263
    %v408 = vunpack.c.h.b16 %v263
    %v409 = vunpack.c.l.b16 %v264
    %v410 = vunpack.c.l.b16 %v265
    %v411 = vunpack.c.h.b16 %v265
    %v412 = vunpack.c.l.b16 %v266
    %v413 = vunpack.c.h.b16 %v266
    %v414 = vunpack.c.l.b16 %v267
    %v415 = vunpack.c.l.b16 %v268
    %v416 = vunpack.c.h.b16 %v268
    %v417 = vunpack.c.l.b16 %v269
    %v418 = vunpack.c.h.b16 %v269
    %v419 = vunpack.c.l.b16 %v270
    %v420 = vunpack.c.l.b16 %v271
    %v421 = vunpack.c.h.b16 %v271
    %v422 = vunpack.c.l.b16 %v272
    %v423 = vunpack.c.h.b16 %v272
    %v424 = vunpack.c.l.b16 %v273
    %v425 = vunpack.c.l.b16 %v274
    %v426 = vunpack.c.h.b16 %v274
    %v427 = vunpack.c.l.b16 %v275
    %v428 = vunpack.c.h.b16 %v275
    %v429 = vunpack.c.l.b16 %v276
    %v430 = vunpack.c.l.b16 %v277
    %v431 = vunpack.c.h.b16 %v277
    %v432 = vunpack.c.l.b16 %v278
    %v433 = vunpack.c.h.b16 %v278
    %v434 = vunpack.c.l.b16 %v279
    %v435 = vpack.c.b16 %v360, %v355
    %v436 = vpack.c.b16 %v361, %v356
    %v437 = vpack.c.b16 %v362, %v357
    %v438 = vpack.c.b16 %v363, %v358
    %v439 = vpack.c.b16 %v364, %v359
    %v440 = vpack.c.b16 %v370, %v365
    %v441 = vpack.c.b16 %v371, %v366
    %v442 = vpack.c.b16 %v372, %v367
    %v443 = vpack.c.b16 %v373, %v368
    %v444 = vpack.c.b16 %v374, %v369
    %v445 = vpack.c.b16 %v380, %v375
    %v446 = vpack.c.b16 %v381, %v376
    %v447 = vpack.c.b16 %v382, %v377
    %v448 = vpack.c.b16 %v383, %v378
    %v449 = vpack.c.b16 %v384, %v379
    %v450 = vpack.c.b16 %v390, %v385
    %v451 = vpack.c.b16 %v391, %v386
    %v452 = vpack.c.b16 %v392, %v387
    %v453 = vpack.c.b16 %v393, %v388
    %v454 = vpack.c.b16 %v394, %v389
    %v455 = vpack.c.b16 %v400, %v395
    %v456 = vpack.c.b16 %v401, %v396
    %v457 = vpack.c.b16 %v402, %v397
    %v458 = vpack.c.b16 %v403, %v398
    %v459 = vpack.c.b16 %v404, %v399
    %v460 = vpack.c.b16 %v410, %v405
    %v461 = vpack.c.b16 %v411, %v406
    %v462 = vpack.c.b16 %v412, %v407
    %v463 = vpack.c.b16 %v413, %v408
    %v464 = vpack.c.b16 %v414, %v409
    %v465 = vpack.c.b16 %v420, %v415
    %v466 = vpack.c.b16 %v421, %v416
    %v467 = vpack.c.b16 %v422, %v417
    %v468 = vpack.c.b16 %v423, %v418
    %v469 = vpack.c.b16 %v424, %v419
    %v470 = vpack.c.b16 %v430, %v425
    %v471 = vpack.c.b16 %v431, %v426
    %v472 = vpack.c.b16 %v432, %v427
    %v473 = vpack.c.b16 %v433, %v428
    %v474 = vpack.c.b16 %v434, %v429
    %515 = vmatprep.subr.bf16.mxu0 %v436
    %516 = vmatpush1.bf16.msra.mxu0 %v435
    %517 = vmatprep.subr.bf16.mxu0 %v441
    %518 = vmatpush1.bf16.msra.mxu0 %v440
    %519 = vmatprep.subr.bf16.mxu0 %v446
    %520 = vmatpush1.bf16.msra.mxu0 %v445
    %521 = vmatprep.subr.bf16.mxu0 %v451
    %522 = vmatpush1.bf16.msra.mxu0 %v450
    %523 = vmatprep.subr.bf16.mxu0 %v456
    %524 = vmatpush1.bf16.msra.mxu0 %v455
    %525 = vmatprep.subr.bf16.mxu0 %v461
    %526 = vmatpush1.bf16.msra.mxu0 %v460
    %527 = vmatprep.subr.bf16.mxu0 %v466
    %528 = vmatpush1.bf16.msra.mxu0 %v465
    %529 = vmatprep.subr.bf16.mxu0 %v471
    %530 = vmatpush1.bf16.msra.mxu0 %v470
    %531 = vmatprep.subr.bf16.mxu0 0
    %532 = vmatpush1.bf16.msra.mxu0 0
    %533 = vmatprep.subr.bf16.mxu0 0
    %534 = vmatpush1.bf16.msra.mxu0 0
    %535 = vmatprep.subr.bf16.mxu0 0
    %536 = vmatpush1.bf16.msra.mxu0 0
    %537 = vmatprep.subr.bf16.mxu0 0
    %538 = vmatpush1.bf16.msra.mxu0 0
    %539 = vmatprep.subr.bf16.mxu0 0
    %540 = vmatpush1.bf16.msra.mxu0 0
    %541 = vmatprep.subr.bf16.mxu0 0
    %542 = vmatpush1.bf16.msra.mxu0 0
    %543 = vmatprep.subr.bf16.mxu0 0
    %544 = vmatpush1.bf16.msra.mxu0 0
    %545 = vmatprep.subr.bf16.mxu0 0
    %546 = vmatpush1.bf16.msra.mxu0 0
    %547 = vmatprep.mubr.bf16.mxu0 0
    %548 = vmatmul.mubr.bf16.gmra.mrb[0].mxu0 %v231
    %v549 = vpop.f32.mrb[0].mxu0
    %v550 = vadd.f32 %v285, %v549
    %v551 = vpop.f32.mrb[0].mxu0
    %v552 = vadd.f32 %v289, %v551
    %v553 = vpop.f32.mrb[0].mxu0
    %v554 = vpop.f32.mrb[0].mxu0
    %555 = vdwg.mxu0
    %556 = vmatprep.subr.bf16.mxu0 %v438
    %557 = vmatpush1.bf16.msra.mxu0 %v437
    %558 = vmatprep.subr.bf16.mxu0 %v443
    %559 = vmatpush1.bf16.msra.mxu0 %v442
    %560 = vmatprep.subr.bf16.mxu0 %v448
    %561 = vmatpush1.bf16.msra.mxu0 %v447
    %562 = vmatprep.subr.bf16.mxu0 %v453
    %563 = vmatpush1.bf16.msra.mxu0 %v452
    %564 = vmatprep.subr.bf16.mxu0 %v458
    %565 = vmatpush1.bf16.msra.mxu0 %v457
    %566 = vmatprep.subr.bf16.mxu0 %v463
    %567 = vmatpush1.bf16.msra.mxu0 %v462
    %568 = vmatprep.subr.bf16.mxu0 %v468
    %569 = vmatpush1.bf16.msra.mxu0 %v467
    %570 = vmatprep.subr.bf16.mxu0 %v473
    %571 = vmatpush1.bf16.msra.mxu0 %v472
    %572 = vmatprep.subr.bf16.mxu0 0
    %573 = vmatpush1.bf16.msra.mxu0 0
    %574 = vmatprep.subr.bf16.mxu0 0
    %575 = vmatpush1.bf16.msra.mxu0 0
    %576 = vmatprep.subr.bf16.mxu0 0
    %577 = vmatpush1.bf16.msra.mxu0 0
    %578 = vmatprep.subr.bf16.mxu0 0
    %579 = vmatpush1.bf16.msra.mxu0 0
    %580 = vmatprep.subr.bf16.mxu0 0
    %581 = vmatpush1.bf16.msra.mxu0 0
    %582 = vmatprep.subr.bf16.mxu0 0
    %583 = vmatpush1.bf16.msra.mxu0 0
    %584 = vmatprep.subr.bf16.mxu0 0
    %585 = vmatpush1.bf16.msra.mxu0 0
    %586 = vmatprep.subr.bf16.mxu0 0
    %587 = vmatpush1.bf16.msra.mxu0 0
    %588 = vmatprep.mubr.bf16.mxu0 0
    %589 = vmatmul.mubr.bf16.gmra.mrb[0].mxu0 %v231
    %v590 = vpop.f32.mrb[0].mxu0
    %v591 = vadd.f32 %v293, %v590
    %v592 = vpop.f32.mrb[0].mxu0
    %v593 = vadd.f32 %v297, %v592
    %v594 = vpop.f32.mrb[0].mxu0
    %v595 = vpop.f32.mrb[0].mxu0
    %596 = vdwg.mxu0
    %597 = vmatprep.subr.bf16.mxu0 0
    %598 = vmatpush1.bf16.msra.mxu0 %v439
    %599 = vmatprep.subr.bf16.mxu0 0
    %600 = vmatpush1.bf16.msra.mxu0 %v444
    %601 = vmatprep.subr.bf16.mxu0 0
    %602 = vmatpush1.bf16.msra.mxu0 %v449
    %603 = vmatprep.subr.bf16.mxu0 0
    %604 = vmatpush1.bf16.msra.mxu0 %v454
    %605 = vmatprep.subr.bf16.mxu0 0
    %606 = vmatpush1.bf16.msra.mxu0 %v459
    %607 = vmatprep.subr.bf16.mxu0 0
    %608 = vmatpush1.bf16.msra.mxu0 %v464
    %609 = vmatprep.subr.bf16.mxu0 0
    %610 = vmatpush1.bf16.msra.mxu0 %v469
    %611 = vmatprep.subr.bf16.mxu0 0
    %612 = vmatpush1.bf16.msra.mxu0 %v474
    %613 = vmatprep.subr.bf16.mxu0 0
    %614 = vmatpush1.bf16.msra.mxu0 0
    %615 = vmatprep.subr.bf16.mxu0 0
    %616 = vmatpush1.bf16.msra.mxu0 0
    %617 = vmatprep.subr.bf16.mxu0 0
    %618 = vmatpush1.bf16.msra.mxu0 0
    %619 = vmatprep.subr.bf16.mxu0 0
    %620 = vmatpush1.bf16.msra.mxu0 0
    %621 = vmatprep.subr.bf16.mxu0 0
    %622 = vmatpush1.bf16.msra.mxu0 0
    %623 = vmatprep.subr.bf16.mxu0 0
    %624 = vmatpush1.bf16.msra.mxu0 0
    %625 = vmatprep.subr.bf16.mxu0 0
    %626 = vmatpush1.bf16.msra.mxu0 0
    %627 = vmatprep.subr.bf16.mxu0 0
    %628 = vmatpush1.bf16.msra.mxu0 0
    %629 = vmatprep.mubr.bf16.mxu0 0
    %630 = vmatmul.mubr.bf16.gmra.mrb[0].mxu0 %v231
    %v631 = vpop.f32.mrb[0].mxu0
    %v632 = vadd.f32 %v301, %v631
    %v633 = vpop.f32.mrb[0].mxu0
    %v634 = vpop.f32.mrb[0].mxu0
    %v635 = vpop.f32.mrb[0].mxu0
    %636 = vdwg.mxu0
    %v637 = vmax.f32 %v550, 0.0
    %v638 = vmax.f32 %v552, 0.0
    %v639 = vmax.f32 %v591, 0.0
    %v640 = vmax.f32 %v593, 0.0
    %641 = vmax.xlane.f32.xlu0 %v632
    %v642 = vpop.xlane.xlu0 %641
    %v643 = vsub.f32 %v632, %v642
    %v644 = vmul.f32 %v643, 1.442695
    %v645 = vpow.pop %v644
    %646 = vadd.xlane.f32.xlu0 %v645
    %v647 = vpop.xlane.xlu0 %646
    %v648 = vrcp.pop %v647
    %v649 = vmul.f32 %v645, %v648
    %651 = vset.pattern.permute.xlu0 0
    %652 = vperm.xlu0 %651, %v649
    %v653 = vpop.permute.xlu0 %652
    %v655 = vmul.f32 %v653, %v637
    %656 = vset.pattern.permute.xlu0 1
    %657 = vperm.xlu0 %656, %v649
    %v658 = vpop.permute.xlu0 %657
    %v660 = vmul.f32 %v658, %v638
    %v661 = vadd.f32 %v655, %v660
    %662 = vset.pattern.permute.xlu0 2
    %663 = vperm.xlu0 %662, %v649
    %v664 = vpop.permute.xlu0 %663
    %v666 = vmul.f32 %v664, %v639
    %v667 = vadd.f32 %v661, %v666
    %668 = vset.pattern.permute.xlu0 3
    %669 = vperm.xlu0 %668, %v649
    %v670 = vpop.permute.xlu0 %669
    %v672 = vmul.f32 %v670, %v640
    %v673 = vadd.f32 %v667, %v672
    %v674 = vpack.c.bf16 %v673, %v673
    %s675 = scalar_lea.vmem %s3, 320
    %v676 = vld [vmem:[%s675] sm:$0xff]
    %v677 = vld [vmem:[%s675 + $0x8] sm:$0xff]
    %v678 = vld [vmem:[%s675 + $0x10] sm:$0xf]
    %v679 = vld [vmem:[%s675 + $0x14] sm:$0xff]
    %v680 = vld [vmem:[%s675 + $0x1c] sm:$0xff]
    %v681 = vld [vmem:[%s675 + $0x24] sm:$0xf]
    %v682 = vld [vmem:[%s675 + $0x28] sm:$0xff]
    %v683 = vld [vmem:[%s675 + $0x30] sm:$0xff]
    %v684 = vld [vmem:[%s675 + $0x38] sm:$0xf]
    %v685 = vld [vmem:[%s675 + $0x3c] sm:$0xff]
    %v686 = vld [vmem:[%s675 + $0x44] sm:$0xff]
    %v687 = vld [vmem:[%s675 + $0x4c] sm:$0xf]
    %v688 = vld [vmem:[%s675 + $0x50] sm:$0xff]
    %v689 = vld [vmem:[%s675 + $0x58] sm:$0xff]
    %v690 = vld [vmem:[%s675 + $0x60] sm:$0xf]
    %v691 = vld [vmem:[%s675 + $0x64] sm:$0xff]
    %v692 = vld [vmem:[%s675 + $0x6c] sm:$0xff]
    %v693 = vld [vmem:[%s675 + $0x74] sm:$0xf]
    %v694 = vld [vmem:[%s675 + $0x78] sm:$0xff]
    %v695 = vld [vmem:[%s675 + $0x80] sm:$0xff]
    %v696 = vld [vmem:[%s675 + $0x88] sm:$0xf]
    %v697 = vld [vmem:[%s675 + $0x8c] sm:$0xff]
    %v698 = vld [vmem:[%s675 + $0x94] sm:$0xff]
    %v699 = vld [vmem:[%s675 + $0x9c] sm:$0xf]
    %v700 = vld [vmem:[%s675 + $0xa0] sm:$0xff]
    %v701 = vld [vmem:[%s675 + $0xa8] sm:$0xff]
    %v702 = vld [vmem:[%s675 + $0xb0] sm:$0xf]
    %v703 = vld [vmem:[%s675 + $0xb4] sm:$0xff]
    %v704 = vld [vmem:[%s675 + $0xbc] sm:$0xff]
    %v705 = vld [vmem:[%s675 + $0xc4] sm:$0xf]
    %v706 = vld [vmem:[%s675 + $0xc8] sm:$0xff]
    %v707 = vld [vmem:[%s675 + $0xd0] sm:$0xff]
    %v708 = vld [vmem:[%s675 + $0xd8] sm:$0xf]
    %v709 = vld [vmem:[%s675 + $0xdc] sm:$0xff]
    %v710 = vld [vmem:[%s675 + $0xe4] sm:$0xff]
    %v711 = vld [vmem:[%s675 + $0xec] sm:$0xf]
    %v712 = vld [vmem:[%s675 + $0xf0] sm:$0xff]
    %v713 = vld [vmem:[%s675 + $0xf8] sm:$0xff]
    %v714 = vld [vmem:[%s675 + $0x100] sm:$0xf]
    %v715 = vld [vmem:[%s675 + $0x104] sm:$0xff]
    %v716 = vld [vmem:[%s675 + $0x10c] sm:$0xff]
    %v717 = vld [vmem:[%s675 + $0x114] sm:$0xf]
    %v718 = vld [vmem:[%s675 + $0x118] sm:$0xff]
    %v719 = vld [vmem:[%s675 + $0x120] sm:$0xff]
    %v720 = vld [vmem:[%s675 + $0x128] sm:$0xf]
    %v721 = vld [vmem:[%s675 + $0x12c] sm:$0xff]
    %v722 = vld [vmem:[%s675 + $0x134] sm:$0xff]
    %v723 = vld [vmem:[%s675 + $0x13c] sm:$0xf]
    %s724 = scalar_lea.vmem %s4, 5
    %v725 = vld [vmem:[%s724] sm:$0x1f]
    %v727 = vlaneseq
    %v728 = vshrl.u32 %v727, 7
    %v729 = vsub.s32 0, %v728
    %v730 = vrot.slane %v725, %v729
    %v731 = vlaneseq
    %v732 = vshrl.u32 %v731, 7
    %v733 = vsub.s32 1, %v732
    %v734 = vrot.slane %v725, %v733
    %v735 = vlaneseq
    %v736 = vshrl.u32 %v735, 7
    %v737 = vsub.s32 2, %v736
    %v738 = vrot.slane %v725, %v737
    %v739 = vlaneseq
    %v740 = vshrl.u32 %v739, 7
    %v741 = vsub.s32 3, %v740
    %v742 = vrot.slane %v725, %v741
    %v743 = vlaneseq
    %v744 = vshrl.u32 %v743, 7
    %v745 = vsub.s32 4, %v744
    %v746 = vrot.slane %v725, %v745
    %v800 = vunpack.c.l.b16 %v676
    %v801 = vunpack.c.h.b16 %v676
    %v802 = vunpack.c.l.b16 %v677
    %v803 = vunpack.c.h.b16 %v677
    %v804 = vunpack.c.l.b16 %v678
    %v805 = vunpack.c.l.b16 %v679
    %v806 = vunpack.c.h.b16 %v679
    %v807 = vunpack.c.l.b16 %v680
    %v808 = vunpack.c.h.b16 %v680
    %v809 = vunpack.c.l.b16 %v681
    %v810 = vunpack.c.l.b16 %v682
    %v811 = vunpack.c.h.b16 %v682
    %v812 = vunpack.c.l.b16 %v683
    %v813 = vunpack.c.h.b16 %v683
    %v814 = vunpack.c.l.b16 %v684
    %v815 = vunpack.c.l.b16 %v685
    %v816 = vunpack.c.h.b16 %v685
    %v817 = vunpack.c.l.b16 %v686
    %v818 = vunpack.c.h.b16 %v686
    %v819 = vunpack.c.l.b16 %v687
    %v820 = vunpack.c.l.b16 %v688
    %v821 = vunpack.c.h.b16 %v688
    %v822 = vunpack.c.l.b16 %v689
    %v823 = vunpack.c.h.b16 %v689
    %v824 = vunpack.c.l.b16 %v690
    %v825 = vunpack.c.l.b16 %v691
    %v826 = vunpack.c.h.b16 %v691
    %v827 = vunpack.c.l.b16 %v692
    %v828 = vunpack.c.h.b16 %v692
    %v829 = vunpack.c.l.b16 %v693
    %v830 = vunpack.c.l.b16 %v694
    %v831 = vunpack.c.h.b16 %v694
    %v832 = vunpack.c.l.b16 %v695
    %v833 = vunpack.c.h.b16 %v695
    %v834 = vunpack.c.l.b16 %v696
    %v835 = vunpack.c.l.b16 %v697
    %v836 = vunpack.c.h.b16 %v697
    %v837 = vunpack.c.l.b16 %v698
    %v838 = vunpack.c.h.b16 %v698
    %v839 = vunpack.c.l.b16 %v699
    %v840 = vunpack.c.l.b16 %v700
    %v841 = vunpack.c.h.b16 %v700
    %v842 = vunpack.c.l.b16 %v701
    %v843 = vunpack.c.h.b16 %v701
    %v844 = vunpack.c.l.b16 %v702
    %v845 = vunpack.c.l.b16 %v703
    %v846 = vunpack.c.h.b16 %v703
    %v847 = vunpack.c.l.b16 %v704
    %v848 = vunpack.c.h.b16 %v704
    %v849 = vunpack.c.l.b16 %v705
    %v850 = vunpack.c.l.b16 %v706
    %v851 = vunpack.c.h.b16 %v706
    %v852 = vunpack.c.l.b16 %v707
    %v853 = vunpack.c.h.b16 %v707
    %v854 = vunpack.c.l.b16 %v708
    %v855 = vunpack.c.l.b16 %v709
    %v856 = vunpack.c.h.b16 %v709
    %v857 = vunpack.c.l.b16 %v710
    %v858 = vunpack.c.h.b16 %v710
    %v859 = vunpack.c.l.b16 %v711
    %v860 = vunpack.c.l.b16 %v712
    %v861 = vunpack.c.h.b16 %v712
    %v862 = vunpack.c.l.b16 %v713
    %v863 = vunpack.c.h.b16 %v713
    %v864 = vunpack.c.l.b16 %v714
    %v865 = vunpack.c.l.b16 %v715
    %v866 = vunpack.c.h.b16 %v715
    %v867 = vunpack.c.l.b16 %v716
    %v868 = vunpack.c.h.b16 %v716
    %v869 = vunpack.c.l.b16 %v717
    %v870 = vunpack.c.l.b16 %v718
    %v871 = vunpack.c.h.b16 %v718
    %v872 = vunpack.c.l.b16 %v719
    %v873 = vunpack.c.h.b16 %v719
    %v874 = vunpack.c.l.b16 %v720
    %v875 = vunpack.c.l.b16 %v721
    %v876 = vunpack.c.h.b16 %v721
    %v877 = vunpack.c.l.b16 %v722
    %v878 = vunpack.c.h.b16 %v722
    %v879 = vunpack.c.l.b16 %v723
    %v880 = vpack.c.b16 %v805, %v800
    %v881 = vpack.c.b16 %v806, %v801
    %v882 = vpack.c.b16 %v807, %v802
    %v883 = vpack.c.b16 %v808, %v803
    %v884 = vpack.c.b16 %v809, %v804
    %v885 = vpack.c.b16 %v815, %v810
    %v886 = vpack.c.b16 %v816, %v811
    %v887 = vpack.c.b16 %v817, %v812
    %v888 = vpack.c.b16 %v818, %v813
    %v889 = vpack.c.b16 %v819, %v814
    %v890 = vpack.c.b16 %v825, %v820
    %v891 = vpack.c.b16 %v826, %v821
    %v892 = vpack.c.b16 %v827, %v822
    %v893 = vpack.c.b16 %v828, %v823
    %v894 = vpack.c.b16 %v829, %v824
    %v895 = vpack.c.b16 %v835, %v830
    %v896 = vpack.c.b16 %v836, %v831
    %v897 = vpack.c.b16 %v837, %v832
    %v898 = vpack.c.b16 %v838, %v833
    %v899 = vpack.c.b16 %v839, %v834
    %v900 = vpack.c.b16 %v845, %v840
    %v901 = vpack.c.b16 %v846, %v841
    %v902 = vpack.c.b16 %v847, %v842
    %v903 = vpack.c.b16 %v848, %v843
    %v904 = vpack.c.b16 %v849, %v844
    %v905 = vpack.c.b16 %v855, %v850
    %v906 = vpack.c.b16 %v856, %v851
    %v907 = vpack.c.b16 %v857, %v852
    %v908 = vpack.c.b16 %v858, %v853
    %v909 = vpack.c.b16 %v859, %v854
    %v910 = vpack.c.b16 %v865, %v860
    %v911 = vpack.c.b16 %v866, %v861
    %v912 = vpack.c.b16 %v867, %v862
    %v913 = vpack.c.b16 %v868, %v863
    %v914 = vpack.c.b16 %v869, %v864
    %v915 = vpack.c.b16 %v875, %v870
    %v916 = vpack.c.b16 %v876, %v871
    %v917 = vpack.c.b16 %v877, %v872
    %v918 = vpack.c.b16 %v878, %v873
    %v919 = vpack.c.b16 %v879, %v874
    %960 = vmatprep.subr.bf16.mxu0 %v881
    %961 = vmatpush1.bf16.msra.mxu0 %v880
    %962 = vmatprep.subr.bf16.mxu0 %v886
    %963 = vmatpush1.bf16.msra.mxu0 %v885
    %964 = vmatprep.subr.bf16.mxu0 %v891
    %965 = vmatpush1.bf16.msra.mxu0 %v890
    %966 = vmatprep.subr.bf16.mxu0 %v896
    %967 = vmatpush1.bf16.msra.mxu0 %v895
    %968 = vmatprep.subr.bf16.mxu0 %v901
    %969 = vmatpush1.bf16.msra.mxu0 %v900
    %970 = vmatprep.subr.bf16.mxu0 %v906
    %971 = vmatpush1.bf16.msra.mxu0 %v905
    %972 = vmatprep.subr.bf16.mxu0 %v911
    %973 = vmatpush1.bf16.msra.mxu0 %v910
    %974 = vmatprep.subr.bf16.mxu0 %v916
    %975 = vmatpush1.bf16.msra.mxu0 %v915
    %976 = vmatprep.subr.bf16.mxu0 0
    %977 = vmatpush1.bf16.msra.mxu0 0
    %978 = vmatprep.subr.bf16.mxu0 0
    %979 = vmatpush1.bf16.msra.mxu0 0
    %980 = vmatprep.subr.bf16.mxu0 0
    %981 = vmatpush1.bf16.msra.mxu0 0
    %982 = vmatprep.subr.bf16.mxu0 0
    %983 = vmatpush1.bf16.msra.mxu0 0
    %984 = vmatprep.subr.bf16.mxu0 0
    %985 = vmatpush1.bf16.msra.mxu0 0
    %986 = vmatprep.subr.bf16.mxu0 0
    %987 = vmatpush1.bf16.msra.mxu0 0
    %988 = vmatprep.subr.bf16.mxu0 0
    %989 = vmatpush1.bf16.msra.mxu0 0
    %990 = vmatprep.subr.bf16.mxu0 0
    %991 = vmatpush1.bf16.msra.mxu0 0
    %992 = vmatprep.mubr.bf16.mxu0 0
    %993 = vmatmul.mubr.bf16.gmra.mrb[0].mxu0 %v674
    %v994 = vpop.f32.mrb[0].mxu0
    %v995 = vadd.f32 %v730, %v994
    %v996 = vpop.f32.mrb[0].mxu0
    %v997 = vadd.f32 %v734, %v996
    %v998 = vpop.f32.mrb[0].mxu0
    %v999 = vpop.f32.mrb[0].mxu0
    %1000 = vdwg.mxu0
    %1001 = vmatprep.subr.bf16.mxu0 %v883
    %1002 = vmatpush1.bf16.msra.mxu0 %v882
    %1003 = vmatprep.subr.bf16.mxu0 %v888
    %1004 = vmatpush1.bf16.msra.mxu0 %v887
    %1005 = vmatprep.subr.bf16.mxu0 %v893
    %1006 = vmatpush1.bf16.msra.mxu0 %v892
    %1007 = vmatprep.subr.bf16.mxu0 %v898
    %1008 = vmatpush1.bf16.msra.mxu0 %v897
    %1009 = vmatprep.subr.bf16.mxu0 %v903
    %1010 = vmatpush1.bf16.msra.mxu0 %v902
    %1011 = vmatprep.subr.bf16.mxu0 %v908
    %1012 = vmatpush1.bf16.msra.mxu0 %v907
    %1013 = vmatprep.subr.bf16.mxu0 %v913
    %1014 = vmatpush1.bf16.msra.mxu0 %v912
    %1015 = vmatprep.subr.bf16.mxu0 %v918
    %1016 = vmatpush1.bf16.msra.mxu0 %v917
    %1017 = vmatprep.subr.bf16.mxu0 0
    %1018 = vmatpush1.bf16.msra.mxu0 0
    %1019 = vmatprep.subr.bf16.mxu0 0
    %1020 = vmatpush1.bf16.msra.mxu0 0
    %1021 = vmatprep.subr.bf16.mxu0 0
    %1022 = vmatpush1.bf16.msra.mxu0 0
    %1023 = vmatprep.subr.bf16.mxu0 0
    %1024 = vmatpush1.bf16.msra.mxu0 0
    %1025 = vmatprep.subr.bf16.mxu0 0
    %1026 = vmatpush1.bf16.msra.mxu0 0
    %1027 = vmatprep.subr.bf16.mxu0 0
    %1028 = vmatpush1.bf16.msra.mxu0 0
    %1029 = vmatprep.subr.bf16.mxu0 0
    %1030 = vmatpush1.bf16.msra.mxu0 0
    %1031 = vmatprep.subr.bf16.mxu0 0
    %1032 = vmatpush1.bf16.msra.mxu0 0
    %1033 = vmatprep.mubr.bf16.mxu0 0
    %1034 = vmatmul.mubr.bf16.gmra.mrb[0].mxu0 %v674
    %v1035 = vpop.f32.mrb[0].mxu0
    %v1036 = vadd.f32 %v738, %v1035
    %v1037 = vpop.f32.mrb[0].mxu0
    %v1038 = vadd.f32 %v742, %v1037
    %v1039 = vpop.f32.mrb[0].mxu0
    %v1040 = vpop.f32.mrb[0].mxu0
    %1041 = vdwg.mxu0
    %1042 = vmatprep.subr.bf16.mxu0 0
    %1043 = vmatpush1.bf16.msra.mxu0 %v884
    %1044 = vmatprep.subr.bf16.mxu0 0
    %1045 = vmatpush1.bf16.msra.mxu0 %v889
    %1046 = vmatprep.subr.bf16.mxu0 0
    %1047 = vmatpush1.bf16.msra.mxu0 %v894
    %1048 = vmatprep.subr.bf16.mxu0 0
    %1049 = vmatpush1.bf16.msra.mxu0 %v899
    %1050 = vmatprep.subr.bf16.mxu0 0
    %1051 = vmatpush1.bf16.msra.mxu0 %v904
    %1052 = vmatprep.subr.bf16.mxu0 0
    %1053 = vmatpush1.bf16.msra.mxu0 %v909
    %1054 = vmatprep.subr.bf16.mxu0 0
    %1055 = vmatpush1.bf16.msra.mxu0 %v914
    %1056 = vmatprep.subr.bf16.mxu0 0
    %1057 = vmatpush1.bf16.msra.mxu0 %v919
    %1058 = vmatprep.subr.bf16.mxu0 0
    %1059 = vmatpush1.bf16.msra.mxu0 0
    %1060 = vmatprep.subr.bf16.mxu0 0
    %1061 = vmatpush1.bf16.msra.mxu0 0
    %1062 = vmatprep.subr.bf16.mxu0 0
    %1063 = vmatpush1.bf16.msra.mxu0 0
    %1064 = vmatprep.subr.bf16.mxu0 0
    %1065 = vmatpush1.bf16.msra.mxu0 0
    %1066 = vmatprep.subr.bf16.mxu0 0
    %1067 = vmatpush1.bf16.msra.mxu0 0
    %1068 = vmatprep.subr.bf16.mxu0 0
    %1069 = vmatpush1.bf16.msra.mxu0 0
    %1070 = vmatprep.subr.bf16.mxu0 0
    %1071 = vmatpush1.bf16.msra.mxu0 0
    %1072 = vmatprep.subr.bf16.mxu0 0
    %1073 = vmatpush1.bf16.msra.mxu0 0
    %1074 = vmatprep.mubr.bf16.mxu0 0
    %1075 = vmatmul.mubr.bf16.gmra.mrb[0].mxu0 %v674
    %v1076 = vpop.f32.mrb[0].mxu0
    %v1077 = vadd.f32 %v746, %v1076
    %v1078 = vpop.f32.mrb[0].mxu0
    %v1079 = vpop.f32.mrb[0].mxu0
    %v1080 = vpop.f32.mrb[0].mxu0
    %1081 = vdwg.mxu0
    %v1082 = vmax.f32 %v995, 0.0
    %v1083 = vmax.f32 %v997, 0.0
    %v1084 = vmax.f32 %v1036, 0.0
    %v1085 = vmax.f32 %v1038, 0.0
    %1086 = vmax.xlane.f32.xlu0 %v1077
    %v1087 = vpop.xlane.xlu0 %1086
    %v1088 = vsub.f32 %v1077, %v1087
    %v1089 = vmul.f32 %v1088, 1.442695
    %v1090 = vpow.pop %v1089
    %1091 = vadd.xlane.f32.xlu0 %v1090
    %v1092 = vpop.xlane.xlu0 %1091
    %v1093 = vrcp.pop %v1092
    %v1094 = vmul.f32 %v1090, %v1093
    %1096 = vset.pattern.permute.xlu0 0
    %1097 = vperm.xlu0 %1096, %v1094
    %v1098 = vpop.permute.xlu0 %1097
    %v1100 = vmul.f32 %v1098, %v1082
    %1101 = vset.pattern.permute.xlu0 1
    %1102 = vperm.xlu0 %1101, %v1094
    %v1103 = vpop.permute.xlu0 %1102
    %v1105 = vmul.f32 %v1103, %v1083
    %v1106 = vadd.f32 %v1100, %v1105
    %1107 = vset.pattern.permute.xlu0 2
    %1108 = vperm.xlu0 %1107, %v1094
    %v1109 = vpop.permute.xlu0 %1108
    %v1111 = vmul.f32 %v1109, %v1084
    %v1112 = vadd.f32 %v1106, %v1111
    %1113 = vset.pattern.permute.xlu0 3
    %1114 = vperm.xlu0 %1113, %v1094
    %v1115 = vpop.permute.xlu0 %1114
    %v1117 = vmul.f32 %v1115, %v1085
    %v1118 = vadd.f32 %v1112, %v1117
    %v1120 = vcombine.high %v1118, %v1118
    %vm1122 = vcmask 1043456
    %v1123 = vsel %vm1122, %v1118, 0.0
    %v1124 = vrot.slane %v1123, 4
    %v1125 = vadd.f32 %v1123, %v1124
    %v1126 = vrot.slane %v1125, 2
    %v1127 = vadd.f32 %v1125, %v1126
    %v1128 = vrot.slane %v1127, 1
    %v1129 = vadd.f32 %v1127, %v1128
    %v1130 = vsel %vm1122, %v1120, 0.0
    %v1131 = vrot.slane %v1130, 4
    %v1132 = vadd.f32 %v1130, %v1131
    %v1133 = vrot.slane %v1132, 2
    %v1134 = vadd.f32 %v1132, %v1133
    %v1135 = vrot.slane %v1134, 1
    %v1136 = vadd.f32 %v1134, %v1135
    %v1137 = vmul.f32 %v1129, 0.25
    %v1138 = vmul.f32 %v1136, 0.25
    %v1139 = vpack.c.bf16 %v1137, %v1137
    %v1140 = vpack.c.bf16 %v1138, %v1138
    %v1141 = vld [vmem:[%s5] sm:$0xf]
    %v1142 = vld [vmem:[%s5 + $0x4] sm:$0xf]
    %v1143 = vld [vmem:[%s5 + $0x8] sm:$0xf]
    %v1144 = vld [vmem:[%s5 + $0xc] sm:$0xf]
    %v1145 = vld [vmem:[%s5 + $0x10] sm:$0xf]
    %v1146 = vld [vmem:[%s5 + $0x14] sm:$0xf]
    %v1147 = vld [vmem:[%s5 + $0x18] sm:$0xf]
    %v1148 = vld [vmem:[%s5 + $0x1c] sm:$0xf]
    %v1149 = vld [vmem:[%s5 + $0x20] sm:$0xf]
    %v1150 = vld [vmem:[%s5 + $0x24] sm:$0xf]
    %v1151 = vld [vmem:[%s5 + $0x28] sm:$0xf]
    %v1152 = vld [vmem:[%s5 + $0x2c] sm:$0xf]
    %v1153 = vld [vmem:[%s5 + $0x30] sm:$0xf]
    %v1154 = vld [vmem:[%s5 + $0x34] sm:$0xf]
    %v1155 = vld [vmem:[%s5 + $0x38] sm:$0xf]
    %v1156 = vld [vmem:[%s5 + $0x3c] sm:$0xf]
    %v1157 = vld [vmem:[%s6] sm:$0x1]
    %v1159 = vlaneseq
    %v1160 = vshrl.u32 %v1159, 7
    %v1161 = vsub.s32 0, %v1160
    %v1162 = vrot.slane %v1157, %v1161
    %v1166 = vunpack.c.l.b16 %v1139
    %v1167 = vunpack.c.l.b16 %v1140
    %vm1168 = vcmask 1041409
    %v1169 = vsel %vm1168, %v1167, %v1166
    %v1170 = vpack.c.b16 %v1169, %v1169
    %v1188 = vunpack.c.l.b16 %v1141
    %v1189 = vunpack.c.l.b16 %v1142
    %v1190 = vunpack.c.l.b16 %v1143
    %v1191 = vunpack.c.l.b16 %v1144
    %v1192 = vunpack.c.l.b16 %v1145
    %v1193 = vunpack.c.l.b16 %v1146
    %v1194 = vunpack.c.l.b16 %v1147
    %v1195 = vunpack.c.l.b16 %v1148
    %v1196 = vunpack.c.l.b16 %v1149
    %v1197 = vunpack.c.l.b16 %v1150
    %v1198 = vunpack.c.l.b16 %v1151
    %v1199 = vunpack.c.l.b16 %v1152
    %v1200 = vunpack.c.l.b16 %v1153
    %v1201 = vunpack.c.l.b16 %v1154
    %v1202 = vunpack.c.l.b16 %v1155
    %v1203 = vunpack.c.l.b16 %v1156
    %v1204 = vpack.c.b16 %v1189, %v1188
    %v1205 = vpack.c.b16 %v1191, %v1190
    %v1206 = vpack.c.b16 %v1193, %v1192
    %v1207 = vpack.c.b16 %v1195, %v1194
    %v1208 = vpack.c.b16 %v1197, %v1196
    %v1209 = vpack.c.b16 %v1199, %v1198
    %v1210 = vpack.c.b16 %v1201, %v1200
    %v1211 = vpack.c.b16 %v1203, %v1202
    %1220 = vmatprep.subr.bf16.mxu0 0
    %1221 = vmatpush1.bf16.msra.mxu0 %v1204
    %1222 = vmatprep.subr.bf16.mxu0 0
    %1223 = vmatpush1.bf16.msra.mxu0 %v1205
    %1224 = vmatprep.subr.bf16.mxu0 0
    %1225 = vmatpush1.bf16.msra.mxu0 %v1206
    %1226 = vmatprep.subr.bf16.mxu0 0
    %1227 = vmatpush1.bf16.msra.mxu0 %v1207
    %1228 = vmatprep.subr.bf16.mxu0 0
    %1229 = vmatpush1.bf16.msra.mxu0 %v1208
    %1230 = vmatprep.subr.bf16.mxu0 0
    %1231 = vmatpush1.bf16.msra.mxu0 %v1209
    %1232 = vmatprep.subr.bf16.mxu0 0
    %1233 = vmatpush1.bf16.msra.mxu0 %v1210
    %1234 = vmatprep.subr.bf16.mxu0 0
    %1235 = vmatpush1.bf16.msra.mxu0 %v1211
    %1236 = vmatprep.subr.bf16.mxu0 0
    %1237 = vmatpush1.bf16.msra.mxu0 0
    %1238 = vmatprep.subr.bf16.mxu0 0
    %1239 = vmatpush1.bf16.msra.mxu0 0
    %1240 = vmatprep.subr.bf16.mxu0 0
    %1241 = vmatpush1.bf16.msra.mxu0 0
    %1242 = vmatprep.subr.bf16.mxu0 0
    %1243 = vmatpush1.bf16.msra.mxu0 0
    %1244 = vmatprep.subr.bf16.mxu0 0
    %1245 = vmatpush1.bf16.msra.mxu0 0
    %1246 = vmatprep.subr.bf16.mxu0 0
    %1247 = vmatpush1.bf16.msra.mxu0 0
    %1248 = vmatprep.subr.bf16.mxu0 0
    %1249 = vmatpush1.bf16.msra.mxu0 0
    %1250 = vmatprep.subr.bf16.mxu0 0
    %1251 = vmatpush1.bf16.msra.mxu0 0
    %1252 = vmatprep.mubr.bf16.mxu0 0
    %1253 = vmatmul.mubr.bf16.gmra.mrb[0].mxu0 %v1170
    %v1254 = vpop.f32.mrb[0].mxu0
    %v1255 = vadd.f32 %v1162, %v1254
    %v1256 = vpop.f32.mrb[0].mxu0
    %v1257 = vpop.f32.mrb[0].mxu0
    %v1258 = vpop.f32.mrb[0].mxu0
    %1259 = vdwg.mxu0
    %v1260 = vpack.c.bf16 %v1255, %v1255
    %v1261 = vld [vmem:[%s7] sm:$0xf]
    %v1262 = vld [vmem:[%s7 + $0x4] sm:$0xf]
    %v1263 = vld [vmem:[%s7 + $0x8] sm:$0xf]
    %v1264 = vld [vmem:[%s7 + $0xc] sm:$0xf]
    %v1265 = vld [vmem:[%s7 + $0x10] sm:$0xf]
    %v1266 = vld [vmem:[%s7 + $0x14] sm:$0xf]
    %v1267 = vld [vmem:[%s7 + $0x18] sm:$0xf]
    %v1268 = vld [vmem:[%s7 + $0x1c] sm:$0xf]
    %v1269 = vld [vmem:[%s7 + $0x20] sm:$0xf]
    %v1270 = vld [vmem:[%s7 + $0x24] sm:$0xf]
    %v1271 = vld [vmem:[%s7 + $0x28] sm:$0xf]
    %v1272 = vld [vmem:[%s7 + $0x2c] sm:$0xf]
    %v1273 = vld [vmem:[%s7 + $0x30] sm:$0xf]
    %v1274 = vld [vmem:[%s7 + $0x34] sm:$0xf]
    %v1275 = vld [vmem:[%s7 + $0x38] sm:$0xf]
    %v1276 = vld [vmem:[%s7 + $0x3c] sm:$0xf]
    %v1277 = vld [vmem:[%s8] sm:$0x1]
    %v1279 = vlaneseq
    %v1280 = vshrl.u32 %v1279, 7
    %v1281 = vsub.s32 0, %v1280
    %v1282 = vrot.slane %v1277, %v1281
    %v1300 = vunpack.c.l.b16 %v1261
    %v1301 = vunpack.c.l.b16 %v1262
    %v1302 = vunpack.c.l.b16 %v1263
    %v1303 = vunpack.c.l.b16 %v1264
    %v1304 = vunpack.c.l.b16 %v1265
    %v1305 = vunpack.c.l.b16 %v1266
    %v1306 = vunpack.c.l.b16 %v1267
    %v1307 = vunpack.c.l.b16 %v1268
    %v1308 = vunpack.c.l.b16 %v1269
    %v1309 = vunpack.c.l.b16 %v1270
    %v1310 = vunpack.c.l.b16 %v1271
    %v1311 = vunpack.c.l.b16 %v1272
    %v1312 = vunpack.c.l.b16 %v1273
    %v1313 = vunpack.c.l.b16 %v1274
    %v1314 = vunpack.c.l.b16 %v1275
    %v1315 = vunpack.c.l.b16 %v1276
    %v1316 = vpack.c.b16 %v1301, %v1300
    %v1317 = vpack.c.b16 %v1303, %v1302
    %v1318 = vpack.c.b16 %v1305, %v1304
    %v1319 = vpack.c.b16 %v1307, %v1306
    %v1320 = vpack.c.b16 %v1309, %v1308
    %v1321 = vpack.c.b16 %v1311, %v1310
    %v1322 = vpack.c.b16 %v1313, %v1312
    %v1323 = vpack.c.b16 %v1315, %v1314
    %1332 = vmatprep.subr.bf16.mxu0 0
    %1333 = vmatpush1.bf16.msra.mxu0 %v1316
    %1334 = vmatprep.subr.bf16.mxu0 0
    %1335 = vmatpush1.bf16.msra.mxu0 %v1317
    %1336 = vmatprep.subr.bf16.mxu0 0
    %1337 = vmatpush1.bf16.msra.mxu0 %v1318
    %1338 = vmatprep.subr.bf16.mxu0 0
    %1339 = vmatpush1.bf16.msra.mxu0 %v1319
    %1340 = vmatprep.subr.bf16.mxu0 0
    %1341 = vmatpush1.bf16.msra.mxu0 %v1320
    %1342 = vmatprep.subr.bf16.mxu0 0
    %1343 = vmatpush1.bf16.msra.mxu0 %v1321
    %1344 = vmatprep.subr.bf16.mxu0 0
    %1345 = vmatpush1.bf16.msra.mxu0 %v1322
    %1346 = vmatprep.subr.bf16.mxu0 0
    %1347 = vmatpush1.bf16.msra.mxu0 %v1323
    %1348 = vmatprep.subr.bf16.mxu0 0
    %1349 = vmatpush1.bf16.msra.mxu0 0
    %1350 = vmatprep.subr.bf16.mxu0 0
    %1351 = vmatpush1.bf16.msra.mxu0 0
    %1352 = vmatprep.subr.bf16.mxu0 0
    %1353 = vmatpush1.bf16.msra.mxu0 0
    %1354 = vmatprep.subr.bf16.mxu0 0
    %1355 = vmatpush1.bf16.msra.mxu0 0
    %1356 = vmatprep.subr.bf16.mxu0 0
    %1357 = vmatpush1.bf16.msra.mxu0 0
    %1358 = vmatprep.subr.bf16.mxu0 0
    %1359 = vmatpush1.bf16.msra.mxu0 0
    %1360 = vmatprep.subr.bf16.mxu0 0
    %1361 = vmatpush1.bf16.msra.mxu0 0
    %1362 = vmatprep.subr.bf16.mxu0 0
    %1363 = vmatpush1.bf16.msra.mxu0 0
    %1364 = vmatprep.mubr.bf16.mxu0 0
    %1365 = vmatmul.mubr.bf16.gmra.mrb[0].mxu0 %v1260
    %v1366 = vpop.f32.mrb[0].mxu0
    %v1367 = vadd.f32 %v1282, %v1366
    %v1368 = vpop.f32.mrb[0].mxu0
    %v1369 = vpop.f32.mrb[0].mxu0
    %v1370 = vpop.f32.mrb[0].mxu0
    %1371 = vdwg.mxu0
    %1372 = vst [vmem:[#allocation5] sm:$0x3] %v1255
    %1373 = vst [vmem:[#allocation8] sm:$0x3] %v1367
    %v1374 = vpack.c.bf16 %v637, %v637
    %v1375 = vpack.c.bf16 %v638, %v638
    %v1376 = vpack.c.bf16 %v639, %v639
    %v1377 = vpack.c.bf16 %v640, %v640
    %v1382 = vunpack.c.l.b16 %v1374
    %v1383 = vunpack.c.l.b16 %v1375
    %v1384 = vunpack.c.l.b16 %v1376
    %v1385 = vunpack.c.l.b16 %v1377
    %v1386 = vpack.c.b16 %v1383, %v1382
    %v1387 = vpack.c.b16 %v1385, %v1384
    %1390 = vst [vmem:[%s21] sm:$0xff] %v1386
    %1391 = vst [vmem:[%s21 + $0x8] sm:$0xff] %v1387
    %v1392 = vpack.c.bf16 %v1082, %v1082
    %v1393 = vpack.c.bf16 %v1083, %v1083
    %v1394 = vpack.c.bf16 %v1084, %v1084
    %v1395 = vpack.c.bf16 %v1085, %v1085
    %v1400 = vunpack.c.l.b16 %v1392
    %v1401 = vunpack.c.l.b16 %v1393
    %v1402 = vunpack.c.l.b16 %v1394
    %v1403 = vunpack.c.l.b16 %v1395
    %v1404 = vpack.c.b16 %v1401, %v1400
    %v1405 = vpack.c.b16 %v1403, %v1402
    %s1408 = scalar_lea.vmem %s21, 16
    %1409 = vst [vmem:[%s1408] sm:$0xff] %v1404
    %1410 = vst [vmem:[%s1408 + $0x8] sm:$0xff] %v1405
    %1411 = vst [vmem:[%s22] sm:$0xff] %v649
    %s1412 = scalar_lea.vmem %s22, 8
    %1413 = vst [vmem:[%s1412] sm:$0xff] %v1094
    %v1414 = vld [vmem:[%s9] sm:$0xff]
    %v1415 = vld [vmem:[%s9 + $0x8] sm:$0xff]
    %v1416 = vpack.c.bf16 %v1415, %v1414
    %v1417 = vld [vmem:[#allocation2] sm:$0xff]
    %v1418 = vld [vmem:[#allocation2 + $0x8] sm:$0xff]
    %v1419 = vld [vmem:[#allocation2 + $0x10] sm:$0xf]
    %v1420 = vld [vmem:[#allocation2 + $0x14] sm:$0xff]
    %v1421 = vld [vmem:[#allocation2 + $0x1c] sm:$0xff]
    %v1422 = vld [vmem:[#allocation2 + $0x24] sm:$0xf]
    %v1423 = vld [vmem:[#allocation2 + $0x28] sm:$0xff]
    %v1424 = vld [vmem:[#allocation2 + $0x30] sm:$0xff]
    %v1425 = vld [vmem:[#allocation2 + $0x38] sm:$0xf]
    %v1426 = vld [vmem:[#allocation2 + $0x3c] sm:$0xff]
    %v1427 = vld [vmem:[#allocation2 + $0x44] sm:$0xff]
    %v1428 = vld [vmem:[#allocation2 + $0x4c] sm:$0xf]
    %v1429 = vld [vmem:[#allocation2 + $0x50] sm:$0xff]
    %v1430 = vld [vmem:[#allocation2 + $0x58] sm:$0xff]
    %v1431 = vld [vmem:[#allocation2 + $0x60] sm:$0xf]
    %v1432 = vld [vmem:[#allocation2 + $0x64] sm:$0xff]
    %v1433 = vld [vmem:[#allocation2 + $0x6c] sm:$0xff]
    %v1434 = vld [vmem:[#allocation2 + $0x74] sm:$0xf]
    %v1435 = vld [vmem:[#allocation2 + $0x78] sm:$0xff]
    %v1436 = vld [vmem:[#allocation2 + $0x80] sm:$0xff]
    %v1437 = vld [vmem:[#allocation2 + $0x88] sm:$0xf]
    %v1438 = vld [vmem:[#allocation2 + $0x8c] sm:$0xff]
    %v1439 = vld [vmem:[#allocation2 + $0x94] sm:$0xff]
    %v1440 = vld [vmem:[#allocation2 + $0x9c] sm:$0xf]
    %v1441 = vld [vmem:[#allocation2 + $0xa0] sm:$0xff]
    %v1442 = vld [vmem:[#allocation2 + $0xa8] sm:$0xff]
    %v1443 = vld [vmem:[#allocation2 + $0xb0] sm:$0xf]
    %v1444 = vld [vmem:[#allocation2 + $0xb4] sm:$0xff]
    %v1445 = vld [vmem:[#allocation2 + $0xbc] sm:$0xff]
    %v1446 = vld [vmem:[#allocation2 + $0xc4] sm:$0xf]
    %v1447 = vld [vmem:[#allocation2 + $0xc8] sm:$0xff]
    %v1448 = vld [vmem:[#allocation2 + $0xd0] sm:$0xff]
    %v1449 = vld [vmem:[#allocation2 + $0xd8] sm:$0xf]
    %v1450 = vld [vmem:[#allocation2 + $0xdc] sm:$0xff]
    %v1451 = vld [vmem:[#allocation2 + $0xe4] sm:$0xff]
    %v1452 = vld [vmem:[#allocation2 + $0xec] sm:$0xf]
    %v1453 = vld [vmem:[#allocation2 + $0xf0] sm:$0xff]
    %v1454 = vld [vmem:[#allocation2 + $0xf8] sm:$0xff]
    %v1455 = vld [vmem:[#allocation2 + $0x100] sm:$0xf]
    %v1456 = vld [vmem:[#allocation2 + $0x104] sm:$0xff]
    %v1457 = vld [vmem:[#allocation2 + $0x10c] sm:$0xff]
    %v1458 = vld [vmem:[#allocation2 + $0x114] sm:$0xf]
    %v1459 = vld [vmem:[#allocation2 + $0x118] sm:$0xff]
    %v1460 = vld [vmem:[#allocation2 + $0x120] sm:$0xff]
    %v1461 = vld [vmem:[#allocation2 + $0x128] sm:$0xf]
    %v1462 = vld [vmem:[#allocation2 + $0x12c] sm:$0xff]
    %v1463 = vld [vmem:[#allocation2 + $0x134] sm:$0xff]
    %v1464 = vld [vmem:[#allocation2 + $0x13c] sm:$0xf]
    %v1465 = vld [vmem:[%s12] sm:$0x1f]
    %v1467 = vlaneseq
    %v1468 = vshrl.u32 %v1467, 7
    %v1469 = vsub.s32 0, %v1468
    %v1470 = vrot.slane %v1465, %v1469
    %v1471 = vlaneseq
    %v1472 = vshrl.u32 %v1471, 7
    %v1473 = vsub.s32 1, %v1472
    %v1474 = vrot.slane %v1465, %v1473
    %v1475 = vlaneseq
    %v1476 = vshrl.u32 %v1475, 7
    %v1477 = vsub.s32 2, %v1476
    %v1478 = vrot.slane %v1465, %v1477
    %v1479 = vlaneseq
    %v1480 = vshrl.u32 %v1479, 7
    %v1481 = vsub.s32 3, %v1480
    %v1482 = vrot.slane %v1465, %v1481
    %v1483 = vlaneseq
    %v1484 = vshrl.u32 %v1483, 7
    %v1485 = vsub.s32 4, %v1484
    %v1486 = vrot.slane %v1465, %v1485
    %v1540 = vunpack.c.l.b16 %v1417
    %v1541 = vunpack.c.h.b16 %v1417
    %v1542 = vunpack.c.l.b16 %v1418
    %v1543 = vunpack.c.h.b16 %v1418
    %v1544 = vunpack.c.l.b16 %v1419
    %v1545 = vunpack.c.l.b16 %v1420
    %v1546 = vunpack.c.h.b16 %v1420
    %v1547 = vunpack.c.l.b16 %v1421
    %v1548 = vunpack.c.h.b16 %v1421
    %v1549 = vunpack.c.l.b16 %v1422
    %v1550 = vunpack.c.l.b16 %v1423
    %v1551 = vunpack.c.h.b16 %v1423
    %v1552 = vunpack.c.l.b16 %v1424
    %v1553 = vunpack.c.h.b16 %v1424
    %v1554 = vunpack.c.l.b16 %v1425
    %v1555 = vunpack.c.l.b16 %v1426
    %v1556 = vunpack.c.h.b16 %v1426
    %v1557 = vunpack.c.l.b16 %v1427
    %v1558 = vunpack.c.h.b16 %v1427
    %v1559 = vunpack.c.l.b16 %v1428
    %v1560 = vunpack.c.l.b16 %v1429
    %v1561 = vunpack.c.h.b16 %v1429
    %v1562 = vunpack.c.l.b16 %v1430
    %v1563 = vunpack.c.h.b16 %v1430
    %v1564 = vunpack.c.l.b16 %v1431
    %v1565 = vunpack.c.l.b16 %v1432
    %v1566 = vunpack.c.h.b16 %v1432
    %v1567 = vunpack.c.l.b16 %v1433
    %v1568 = vunpack.c.h.b16 %v1433
    %v1569 = vunpack.c.l.b16 %v1434
    %v1570 = vunpack.c.l.b16 %v1435
    %v1571 = vunpack.c.h.b16 %v1435
    %v1572 = vunpack.c.l.b16 %v1436
    %v1573 = vunpack.c.h.b16 %v1436
    %v1574 = vunpack.c.l.b16 %v1437
    %v1575 = vunpack.c.l.b16 %v1438
    %v1576 = vunpack.c.h.b16 %v1438
    %v1577 = vunpack.c.l.b16 %v1439
    %v1578 = vunpack.c.h.b16 %v1439
    %v1579 = vunpack.c.l.b16 %v1440
    %v1580 = vunpack.c.l.b16 %v1441
    %v1581 = vunpack.c.h.b16 %v1441
    %v1582 = vunpack.c.l.b16 %v1442
    %v1583 = vunpack.c.h.b16 %v1442
    %v1584 = vunpack.c.l.b16 %v1443
    %v1585 = vunpack.c.l.b16 %v1444
    %v1586 = vunpack.c.h.b16 %v1444
    %v1587 = vunpack.c.l.b16 %v1445
    %v1588 = vunpack.c.h.b16 %v1445
    %v1589 = vunpack.c.l.b16 %v1446
    %v1590 = vunpack.c.l.b16 %v1447
    %v1591 = vunpack.c.h.b16 %v1447
    %v1592 = vunpack.c.l.b16 %v1448
    %v1593 = vunpack.c.h.b16 %v1448
    %v1594 = vunpack.c.l.b16 %v1449
    %v1595 = vunpack.c.l.b16 %v1450
    %v1596 = vunpack.c.h.b16 %v1450
    %v1597 = vunpack.c.l.b16 %v1451
    %v1598 = vunpack.c.h.b16 %v1451
    %v1599 = vunpack.c.l.b16 %v1452
    %v1600 = vunpack.c.l.b16 %v1453
    %v1601 = vunpack.c.h.b16 %v1453
    %v1602 = vunpack.c.l.b16 %v1454
    %v1603 = vunpack.c.h.b16 %v1454
    %v1604 = vunpack.c.l.b16 %v1455
    %v1605 = vunpack.c.l.b16 %v1456
    %v1606 = vunpack.c.h.b16 %v1456
    %v1607 = vunpack.c.l.b16 %v1457
    %v1608 = vunpack.c.h.b16 %v1457
    %v1609 = vunpack.c.l.b16 %v1458
    %v1610 = vunpack.c.l.b16 %v1459
    %v1611 = vunpack.c.h.b16 %v1459
    %v1612 = vunpack.c.l.b16 %v1460
    %v1613 = vunpack.c.h.b16 %v1460
    %v1614 = vunpack.c.l.b16 %v1461
    %v1615 = vunpack.c.l.b16 %v1462
    %v1616 = vunpack.c.h.b16 %v1462
    %v1617 = vunpack.c.l.b16 %v1463
    %v1618 = vunpack.c.h.b16 %v1463
    %v1619 = vunpack.c.l.b16 %v1464
    %v1620 = vpack.c.b16 %v1545, %v1540
    %v1621 = vpack.c.b16 %v1546, %v1541
    %v1622 = vpack.c.b16 %v1547, %v1542
    %v1623 = vpack.c.b16 %v1548, %v1543
    %v1624 = vpack.c.b16 %v1549, %v1544
    %v1625 = vpack.c.b16 %v1555, %v1550
    %v1626 = vpack.c.b16 %v1556, %v1551
    %v1627 = vpack.c.b16 %v1557, %v1552
    %v1628 = vpack.c.b16 %v1558, %v1553
    %v1629 = vpack.c.b16 %v1559, %v1554
    %v1630 = vpack.c.b16 %v1565, %v1560
    %v1631 = vpack.c.b16 %v1566, %v1561
    %v1632 = vpack.c.b16 %v1567, %v1562
    %v1633 = vpack.c.b16 %v1568, %v1563
    %v1634 = vpack.c.b16 %v1569, %v1564
    %v1635 = vpack.c.b16 %v1575, %v1570
    %v1636 = vpack.c.b16 %v1576, %v1571
    %v1637 = vpack.c.b16 %v1577, %v1572
    %v1638 = vpack.c.b16 %v1578, %v1573
    %v1639 = vpack.c.b16 %v1579, %v1574
    %v1640 = vpack.c.b16 %v1585, %v1580
    %v1641 = vpack.c.b16 %v1586, %v1581
    %v1642 = vpack.c.b16 %v1587, %v1582
    %v1643 = vpack.c.b16 %v1588, %v1583
    %v1644 = vpack.c.b16 %v1589, %v1584
    %v1645 = vpack.c.b16 %v1595, %v1590
    %v1646 = vpack.c.b16 %v1596, %v1591
    %v1647 = vpack.c.b16 %v1597, %v1592
    %v1648 = vpack.c.b16 %v1598, %v1593
    %v1649 = vpack.c.b16 %v1599, %v1594
    %v1650 = vpack.c.b16 %v1605, %v1600
    %v1651 = vpack.c.b16 %v1606, %v1601
    %v1652 = vpack.c.b16 %v1607, %v1602
    %v1653 = vpack.c.b16 %v1608, %v1603
    %v1654 = vpack.c.b16 %v1609, %v1604
    %v1655 = vpack.c.b16 %v1615, %v1610
    %v1656 = vpack.c.b16 %v1616, %v1611
    %v1657 = vpack.c.b16 %v1617, %v1612
    %v1658 = vpack.c.b16 %v1618, %v1613
    %v1659 = vpack.c.b16 %v1619, %v1614
    %1700 = vmatprep.subr.bf16.mxu0 %v1621
    %1701 = vmatpush1.bf16.msra.mxu0 %v1620
    %1702 = vmatprep.subr.bf16.mxu0 %v1626
    %1703 = vmatpush1.bf16.msra.mxu0 %v1625
    %1704 = vmatprep.subr.bf16.mxu0 %v1631
    %1705 = vmatpush1.bf16.msra.mxu0 %v1630
    %1706 = vmatprep.subr.bf16.mxu0 %v1636
    %1707 = vmatpush1.bf16.msra.mxu0 %v1635
    %1708 = vmatprep.subr.bf16.mxu0 %v1641
    %1709 = vmatpush1.bf16.msra.mxu0 %v1640
    %1710 = vmatprep.subr.bf16.mxu0 %v1646
    %1711 = vmatpush1.bf16.msra.mxu0 %v1645
    %1712 = vmatprep.subr.bf16.mxu0 %v1651
    %1713 = vmatpush1.bf16.msra.mxu0 %v1650
    %1714 = vmatprep.subr.bf16.mxu0 %v1656
    %1715 = vmatpush1.bf16.msra.mxu0 %v1655
    %1716 = vmatprep.subr.bf16.mxu0 0
    %1717 = vmatpush1.bf16.msra.mxu0 0
    %1718 = vmatprep.subr.bf16.mxu0 0
    %1719 = vmatpush1.bf16.msra.mxu0 0
    %1720 = vmatprep.subr.bf16.mxu0 0
    %1721 = vmatpush1.bf16.msra.mxu0 0
    %1722 = vmatprep.subr.bf16.mxu0 0
    %1723 = vmatpush1.bf16.msra.mxu0 0
    %1724 = vmatprep.subr.bf16.mxu0 0
    %1725 = vmatpush1.bf16.msra.mxu0 0
    %1726 = vmatprep.subr.bf16.mxu0 0
    %1727 = vmatpush1.bf16.msra.mxu0 0
    %1728 = vmatprep.subr.bf16.mxu0 0
    %1729 = vmatpush1.bf16.msra.mxu0 0
    %1730 = vmatprep.subr.bf16.mxu0 0
    %1731 = vmatpush1.bf16.msra.mxu0 0
    %1732 = vmatprep.mubr.bf16.mxu0 0
    %1733 = vmatmul.mubr.bf16.gmra.mrb[0].mxu0 %v1416
    %v1734 = vpop.f32.mrb[0].mxu0
    %v1735 = vadd.f32 %v1470, %v1734
    %v1736 = vpop.f32.mrb[0].mxu0
    %v1737 = vadd.f32 %v1474, %v1736
    %v1738 = vpop.f32.mrb[0].mxu0
    %v1739 = vadd.f32 %v1470, %v1738
    %v1740 = vpop.f32.mrb[0].mxu0
    %v1741 = vadd.f32 %v1474, %v1740
    %1742 = vdwg.mxu0
    %1743 = vmatprep.subr.bf16.mxu0 %v1623
    %1744 = vmatpush1.bf16.msra.mxu0 %v1622
    %1745 = vmatprep.subr.bf16.mxu0 %v1628
    %1746 = vmatpush1.bf16.msra.mxu0 %v1627
    %1747 = vmatprep.subr.bf16.mxu0 %v1633
    %1748 = vmatpush1.bf16.msra.mxu0 %v1632
    %1749 = vmatprep.subr.bf16.mxu0 %v1638
    %1750 = vmatpush1.bf16.msra.mxu0 %v1637
    %1751 = vmatprep.subr.bf16.mxu0 %v1643
    %1752 = vmatpush1.bf16.msra.mxu0 %v1642
    %1753 = vmatprep.subr.bf16.mxu0 %v1648
    %1754 = vmatpush1.bf16.msra.mxu0 %v1647
    %1755 = vmatprep.subr.bf16.mxu0 %v1653
    %1756 = vmatpush1.bf16.msra.mxu0 %v1652
    %1757 = vmatprep.subr.bf16.mxu0 %v1658
    %1758 = vmatpush1.bf16.msra.mxu0 %v1657
    %1759 = vmatprep.subr.bf16.mxu0 0
    %1760 = vmatpush1.bf16.msra.mxu0 0
    %1761 = vmatprep.subr.bf16.mxu0 0
    %1762 = vmatpush1.bf16.msra.mxu0 0
    %1763 = vmatprep.subr.bf16.mxu0 0
    %1764 = vmatpush1.bf16.msra.mxu0 0
    %1765 = vmatprep.subr.bf16.mxu0 0
    %1766 = vmatpush1.bf16.msra.mxu0 0
    %1767 = vmatprep.subr.bf16.mxu0 0
    %1768 = vmatpush1.bf16.msra.mxu0 0
    %1769 = vmatprep.subr.bf16.mxu0 0
    %1770 = vmatpush1.bf16.msra.mxu0 0
    %1771 = vmatprep.subr.bf16.mxu0 0
    %1772 = vmatpush1.bf16.msra.mxu0 0
    %1773 = vmatprep.subr.bf16.mxu0 0
    %1774 = vmatpush1.bf16.msra.mxu0 0
    %1775 = vmatprep.mubr.bf16.mxu0 0
    %1776 = vmatmul.mubr.bf16.gmra.mrb[0].mxu0 %v1416
    %v1777 = vpop.f32.mrb[0].mxu0
    %v1778 = vadd.f32 %v1478, %v1777
    %v1779 = vpop.f32.mrb[0].mxu0
    %v1780 = vadd.f32 %v1482, %v1779
    %v1781 = vpop.f32.mrb[0].mxu0
    %v1782 = vadd.f32 %v1478, %v1781
    %v1783 = vpop.f32.mrb[0].mxu0
    %v1784 = vadd.f32 %v1482, %v1783
    %1785 = vdwg.mxu0
    %1786 = vmatprep.subr.bf16.mxu0 0
    %1787 = vmatpush1.bf16.msra.mxu0 %v1624
    %1788 = vmatprep.subr.bf16.mxu0 0
    %1789 = vmatpush1.bf16.msra.mxu0 %v1629
    %1790 = vmatprep.subr.bf16.mxu0 0
    %1791 = vmatpush1.bf16.msra.mxu0 %v1634
    %1792 = vmatprep.subr.bf16.mxu0 0
    %1793 = vmatpush1.bf16.msra.mxu0 %v1639
    %1794 = vmatprep.subr.bf16.mxu0 0
    %1795 = vmatpush1.bf16.msra.mxu0 %v1644
    %1796 = vmatprep.subr.bf16.mxu0 0
    %1797 = vmatpush1.bf16.msra.mxu0 %v1649
    %1798 = vmatprep.subr.bf16.mxu0 0
    %1799 = vmatpush1.bf16.msra.mxu0 %v1654
    %1800 = vmatprep.subr.bf16.mxu0 0
    %1801 = vmatpush1.bf16.msra.mxu0 %v1659
    %1802 = vmatprep.subr.bf16.mxu0 0
    %1803 = vmatpush1.bf16.msra.mxu0 0
    %1804 = vmatprep.subr.bf16.mxu0 0
    %1805 = vmatpush1.bf16.msra.mxu0 0
    %1806 = vmatprep.subr.bf16.mxu0 0
    %1807 = vmatpush1.bf16.msra.mxu0 0
    %1808 = vmatprep.subr.bf16.mxu0 0
    %1809 = vmatpush1.bf16.msra.mxu0 0
    %1810 = vmatprep.subr.bf16.mxu0 0
    %1811 = vmatpush1.bf16.msra.mxu0 0
    %1812 = vmatprep.subr.bf16.mxu0 0
    %1813 = vmatpush1.bf16.msra.mxu0 0
    %1814 = vmatprep.subr.bf16.mxu0 0
    %1815 = vmatpush1.bf16.msra.mxu0 0
    %1816 = vmatprep.subr.bf16.mxu0 0
    %1817 = vmatpush1.bf16.msra.mxu0 0
    %1818 = vmatprep.mubr.bf16.mxu0 0
    %1819 = vmatmul.mubr.bf16.gmra.mrb[0].mxu0 %v1416
    %v1820 = vpop.f32.mrb[0].mxu0
    %v1821 = vadd.f32 %v1486, %v1820
    %v1822 = vpop.f32.mrb[0].mxu0
    %v1823 = vpop.f32.mrb[0].mxu0
    %v1824 = vadd.f32 %v1486, %v1823
    %v1825 = vpop.f32.mrb[0].mxu0
    %1826 = vdwg.mxu0
    %v1827 = vmax.f32 %v1735, 0.0
    %v1828 = vmax.f32 %v1737, 0.0
    %v1829 = vmax.f32 %v1778, 0.0
    %v1830 = vmax.f32 %v1780, 0.0
    %v1831 = vmax.f32 %v1739, 0.0
    %v1832 = vmax.f32 %v1741, 0.0
    %v1833 = vmax.f32 %v1782, 0.0
    %v1834 = vmax.f32 %v1784, 0.0
    %1835 = vmax.xlane.f32.xlu0 %v1821
    %v1836 = vpop.xlane.xlu0 %1835
    %1837 = vmax.xlane.f32.xlu0 %v1824
    %v1838 = vpop.xlane.xlu0 %1837
    %v1839 = vsub.f32 %v1821, %v1836
    %v1840 = vsub.f32 %v1824, %v1838
    %v1841 = vmul.f32 %v1839, 1.442695
    %v1842 = vpow.pop %v1841
    %v1843 = vmul.f32 %v1840, 1.442695
    %v1844 = vpow.pop %v1843
    %1845 = vadd.xlane.f32.xlu0 %v1842
    %v1846 = vpop.xlane.xlu0 %1845
    %1847 = vadd.xlane.f32.xlu0 %v1844
    %v1848 = vpop.xlane.xlu0 %1847
    %v1849 = vrcp.pop %v1846
    %v1850 = vmul.f32 %v1842, %v1849
    %v1851 = vrcp.pop %v1848
    %v1852 = vmul.f32 %v1844, %v1851
    %1854 = vset.pattern.permute.xlu0 0
    %1855 = vperm.xlu0 %1854, %v1850
    %v1856 = vpop.permute.xlu0 %1855
    %1859 = vset.pattern.permute.xlu0 0
    %1860 = vperm.xlu0 %1859, %v1852
    %v1861 = vpop.permute.xlu0 %1860
    %v1863 = vmul.f32 %v1856, %v1827
    %v1864 = vmul.f32 %v1861, %v1831
    %1865 = vset.pattern.permute.xlu0 1
    %1866 = vperm.xlu0 %1865, %v1850
    %v1867 = vpop.permute.xlu0 %1866
    %1869 = vset.pattern.permute.xlu0 1
    %1870 = vperm.xlu0 %1869, %v1852
    %v1871 = vpop.permute.xlu0 %1870
    %v1873 = vmul.f32 %v1867, %v1828
    %v1874 = vmul.f32 %v1871, %v1832
    %v1875 = vadd.f32 %v1863, %v1873
    %v1876 = vadd.f32 %v1864, %v1874
    %1877 = vset.pattern.permute.xlu0 2
    %1878 = vperm.xlu0 %1877, %v1850
    %v1879 = vpop.permute.xlu0 %1878
    %1881 = vset.pattern.permute.xlu0 2
    %1882 = vperm.xlu0 %1881, %v1852
    %v1883 = vpop.permute.xlu0 %1882
    %v1885 = vmul.f32 %v1879, %v1829
    %v1886 = vmul.f32 %v1883, %v1833
    %v1887 = vadd.f32 %v1875, %v1885
    %v1888 = vadd.f32 %v1876, %v1886
    %1889 = vset.pattern.permute.xlu0 3
    %1890 = vperm.xlu0 %1889, %v1850
    %v1891 = vpop.permute.xlu0 %1890
    %1893 = vset.pattern.permute.xlu0 3
    %1894 = vperm.xlu0 %1893, %v1852
    %v1895 = vpop.permute.xlu0 %1894
    %v1897 = vmul.f32 %v1891, %v1830
    %v1898 = vmul.f32 %v1895, %v1834
    %v1899 = vadd.f32 %v1887, %v1897
    %v1900 = vadd.f32 %v1888, %v1898
    %v1901 = vpack.c.bf16 %v1900, %v1899
    %s1902 = scalar_lea.vmem [#allocation2], 320
    %v1903 = vld [vmem:[%s1902] sm:$0xff]
    %v1904 = vld [vmem:[%s1902 + $0x8] sm:$0xff]
    %v1905 = vld [vmem:[%s1902 + $0x10] sm:$0xf]
    %v1906 = vld [vmem:[%s1902 + $0x14] sm:$0xff]
    %v1907 = vld [vmem:[%s1902 + $0x1c] sm:$0xff]
    %v1908 = vld [vmem:[%s1902 + $0x24] sm:$0xf]
    %v1909 = vld [vmem:[%s1902 + $0x28] sm:$0xff]
    %v1910 = vld [vmem:[%s1902 + $0x30] sm:$0xff]
    %v1911 = vld [vmem:[%s1902 + $0x38] sm:$0xf]
    %v1912 = vld [vmem:[%s1902 + $0x3c] sm:$0xff]
    %v1913 = vld [vmem:[%s1902 + $0x44] sm:$0xff]
    %v1914 = vld [vmem:[%s1902 + $0x4c] sm:$0xf]
    %v1915 = vld [vmem:[%s1902 + $0x50] sm:$0xff]
    %v1916 = vld [vmem:[%s1902 + $0x58] sm:$0xff]
    %v1917 = vld [vmem:[%s1902 + $0x60] sm:$0xf]
    %v1918 = vld [vmem:[%s1902 + $0x64] sm:$0xff]
    %v1919 = vld [vmem:[%s1902 + $0x6c] sm:$0xff]
    %v1920 = vld [vmem:[%s1902 + $0x74] sm:$0xf]
    %v1921 = vld [vmem:[%s1902 + $0x78] sm:$0xff]
    %v1922 = vld [vmem:[%s1902 + $0x80] sm:$0xff]
    %v1923 = vld [vmem:[%s1902 + $0x88] sm:$0xf]
    %v1924 = vld [vmem:[%s1902 + $0x8c] sm:$0xff]
    %v1925 = vld [vmem:[%s1902 + $0x94] sm:$0xff]
    %v1926 = vld [vmem:[%s1902 + $0x9c] sm:$0xf]
    %v1927 = vld [vmem:[%s1902 + $0xa0] sm:$0xff]
    %v1928 = vld [vmem:[%s1902 + $0xa8] sm:$0xff]
    %v1929 = vld [vmem:[%s1902 + $0xb0] sm:$0xf]
    %v1930 = vld [vmem:[%s1902 + $0xb4] sm:$0xff]
    %v1931 = vld [vmem:[%s1902 + $0xbc] sm:$0xff]
    %v1932 = vld [vmem:[%s1902 + $0xc4] sm:$0xf]
    %v1933 = vld [vmem:[%s1902 + $0xc8] sm:$0xff]
    %v1934 = vld [vmem:[%s1902 + $0xd0] sm:$0xff]
    %v1935 = vld [vmem:[%s1902 + $0xd8] sm:$0xf]
    %v1936 = vld [vmem:[%s1902 + $0xdc] sm:$0xff]
    %v1937 = vld [vmem:[%s1902 + $0xe4] sm:$0xff]
    %v1938 = vld [vmem:[%s1902 + $0xec] sm:$0xf]
    %v1939 = vld [vmem:[%s1902 + $0xf0] sm:$0xff]
    %v1940 = vld [vmem:[%s1902 + $0xf8] sm:$0xff]
    %v1941 = vld [vmem:[%s1902 + $0x100] sm:$0xf]
    %v1942 = vld [vmem:[%s1902 + $0x104] sm:$0xff]
    %v1943 = vld [vmem:[%s1902 + $0x10c] sm:$0xff]
    %v1944 = vld [vmem:[%s1902 + $0x114] sm:$0xf]
    %v1945 = vld [vmem:[%s1902 + $0x118] sm:$0xff]
    %v1946 = vld [vmem:[%s1902 + $0x120] sm:$0xff]
    %v1947 = vld [vmem:[%s1902 + $0x128] sm:$0xf]
    %v1948 = vld [vmem:[%s1902 + $0x12c] sm:$0xff]
    %v1949 = vld [vmem:[%s1902 + $0x134] sm:$0xff]
    %v1950 = vld [vmem:[%s1902 + $0x13c] sm:$0xf]
    %s1951 = scalar_lea.vmem %s12, 5
    %v1952 = vld [vmem:[%s1951] sm:$0x1f]
    %v1954 = vlaneseq
    %v1955 = vshrl.u32 %v1954, 7
    %v1956 = vsub.s32 0, %v1955
    %v1957 = vrot.slane %v1952, %v1956
    %v1958 = vlaneseq
    %v1959 = vshrl.u32 %v1958, 7
    %v1960 = vsub.s32 1, %v1959
    %v1961 = vrot.slane %v1952, %v1960
    %v1962 = vlaneseq
    %v1963 = vshrl.u32 %v1962, 7
    %v1964 = vsub.s32 2, %v1963
    %v1965 = vrot.slane %v1952, %v1964
    %v1966 = vlaneseq
    %v1967 = vshrl.u32 %v1966, 7
    %v1968 = vsub.s32 3, %v1967
    %v1969 = vrot.slane %v1952, %v1968
    %v1970 = vlaneseq
    %v1971 = vshrl.u32 %v1970, 7
    %v1972 = vsub.s32 4, %v1971
    %v1973 = vrot.slane %v1952, %v1972
    %v2027 = vunpack.c.l.b16 %v1903
    %v2028 = vunpack.c.h.b16 %v1903
    %v2029 = vunpack.c.l.b16 %v1904
    %v2030 = vunpack.c.h.b16 %v1904
    %v2031 = vunpack.c.l.b16 %v1905
    %v2032 = vunpack.c.l.b16 %v1906
    %v2033 = vunpack.c.h.b16 %v1906
    %v2034 = vunpack.c.l.b16 %v1907
    %v2035 = vunpack.c.h.b16 %v1907
    %v2036 = vunpack.c.l.b16 %v1908
    %v2037 = vunpack.c.l.b16 %v1909
    %v2038 = vunpack.c.h.b16 %v1909
    %v2039 = vunpack.c.l.b16 %v1910
    %v2040 = vunpack.c.h.b16 %v1910
    %v2041 = vunpack.c.l.b16 %v1911
    %v2042 = vunpack.c.l.b16 %v1912
    %v2043 = vunpack.c.h.b16 %v1912
    %v2044 = vunpack.c.l.b16 %v1913
    %v2045 = vunpack.c.h.b16 %v1913
    %v2046 = vunpack.c.l.b16 %v1914
    %v2047 = vunpack.c.l.b16 %v1915
    %v2048 = vunpack.c.h.b16 %v1915
    %v2049 = vunpack.c.l.b16 %v1916
    %v2050 = vunpack.c.h.b16 %v1916
    %v2051 = vunpack.c.l.b16 %v1917
    %v2052 = vunpack.c.l.b16 %v1918
    %v2053 = vunpack.c.h.b16 %v1918
    %v2054 = vunpack.c.l.b16 %v1919
    %v2055 = vunpack.c.h.b16 %v1919
    %v2056 = vunpack.c.l.b16 %v1920
    %v2057 = vunpack.c.l.b16 %v1921
    %v2058 = vunpack.c.h.b16 %v1921
    %v2059 = vunpack.c.l.b16 %v1922
    %v2060 = vunpack.c.h.b16 %v1922
    %v2061 = vunpack.c.l.b16 %v1923
    %v2062 = vunpack.c.l.b16 %v1924
    %v2063 = vunpack.c.h.b16 %v1924
    %v2064 = vunpack.c.l.b16 %v1925
    %v2065 = vunpack.c.h.b16 %v1925
    %v2066 = vunpack.c.l.b16 %v1926
    %v2067 = vunpack.c.l.b16 %v1927
    %v2068 = vunpack.c.h.b16 %v1927
    %v2069 = vunpack.c.l.b16 %v1928
    %v2070 = vunpack.c.h.b16 %v1928
    %v2071 = vunpack.c.l.b16 %v1929
    %v2072 = vunpack.c.l.b16 %v1930
    %v2073 = vunpack.c.h.b16 %v1930
    %v2074 = vunpack.c.l.b16 %v1931
    %v2075 = vunpack.c.h.b16 %v1931
    %v2076 = vunpack.c.l.b16 %v1932
    %v2077 = vunpack.c.l.b16 %v1933
    %v2078 = vunpack.c.h.b16 %v1933
    %v2079 = vunpack.c.l.b16 %v1934
    %v2080 = vunpack.c.h.b16 %v1934
    %v2081 = vunpack.c.l.b16 %v1935
    %v2082 = vunpack.c.l.b16 %v1936
    %v2083 = vunpack.c.h.b16 %v1936
    %v2084 = vunpack.c.l.b16 %v1937
    %v2085 = vunpack.c.h.b16 %v1937
    %v2086 = vunpack.c.l.b16 %v1938
    %v2087 = vunpack.c.l.b16 %v1939
    %v2088 = vunpack.c.h.b16 %v1939
    %v2089 = vunpack.c.l.b16 %v1940
    %v2090 = vunpack.c.h.b16 %v1940
    %v2091 = vunpack.c.l.b16 %v1941
    %v2092 = vunpack.c.l.b16 %v1942
    %v2093 = vunpack.c.h.b16 %v1942
    %v2094 = vunpack.c.l.b16 %v1943
    %v2095 = vunpack.c.h.b16 %v1943
    %v2096 = vunpack.c.l.b16 %v1944
    %v2097 = vunpack.c.l.b16 %v1945
    %v2098 = vunpack.c.h.b16 %v1945
    %v2099 = vunpack.c.l.b16 %v1946
    %v2100 = vunpack.c.h.b16 %v1946
    %v2101 = vunpack.c.l.b16 %v1947
    %v2102 = vunpack.c.l.b16 %v1948
    %v2103 = vunpack.c.h.b16 %v1948
    %v2104 = vunpack.c.l.b16 %v1949
    %v2105 = vunpack.c.h.b16 %v1949
    %v2106 = vunpack.c.l.b16 %v1950
    %v2107 = vpack.c.b16 %v2032, %v2027
    %v2108 = vpack.c.b16 %v2033, %v2028
    %v2109 = vpack.c.b16 %v2034, %v2029
    %v2110 = vpack.c.b16 %v2035, %v2030
    %v2111 = vpack.c.b16 %v2036, %v2031
    %v2112 = vpack.c.b16 %v2042, %v2037
    %v2113 = vpack.c.b16 %v2043, %v2038
    %v2114 = vpack.c.b16 %v2044, %v2039
    %v2115 = vpack.c.b16 %v2045, %v2040
    %v2116 = vpack.c.b16 %v2046, %v2041
    %v2117 = vpack.c.b16 %v2052, %v2047
    %v2118 = vpack.c.b16 %v2053, %v2048
    %v2119 = vpack.c.b16 %v2054, %v2049
    %v2120 = vpack.c.b16 %v2055, %v2050
    %v2121 = vpack.c.b16 %v2056, %v2051
    %v2122 = vpack.c.b16 %v2062, %v2057
    %v2123 = vpack.c.b16 %v2063, %v2058
    %v2124 = vpack.c.b16 %v2064, %v2059
    %v2125 = vpack.c.b16 %v2065, %v2060
    %v2126 = vpack.c.b16 %v2066, %v2061
    %v2127 = vpack.c.b16 %v2072, %v2067
    %v2128 = vpack.c.b16 %v2073, %v2068
    %v2129 = vpack.c.b16 %v2074, %v2069
    %v2130 = vpack.c.b16 %v2075, %v2070
    %v2131 = vpack.c.b16 %v2076, %v2071
    %v2132 = vpack.c.b16 %v2082, %v2077
    %v2133 = vpack.c.b16 %v2083, %v2078
    %v2134 = vpack.c.b16 %v2084, %v2079
    %v2135 = vpack.c.b16 %v2085, %v2080
    %v2136 = vpack.c.b16 %v2086, %v2081
    %v2137 = vpack.c.b16 %v2092, %v2087
    %v2138 = vpack.c.b16 %v2093, %v2088
    %v2139 = vpack.c.b16 %v2094, %v2089
    %v2140 = vpack.c.b16 %v2095, %v2090
    %v2141 = vpack.c.b16 %v2096, %v2091
    %v2142 = vpack.c.b16 %v2102, %v2097
    %v2143 = vpack.c.b16 %v2103, %v2098
    %v2144 = vpack.c.b16 %v2104, %v2099
    %v2145 = vpack.c.b16 %v2105, %v2100
    %v2146 = vpack.c.b16 %v2106, %v2101
    %2187 = vmatprep.subr.bf16.mxu0 %v2108
    %2188 = vmatpush1.bf16.msra.mxu0 %v2107
    %2189 = vmatprep.subr.bf16.mxu0 %v2113
    %2190 = vmatpush1.bf16.msra.mxu0 %v2112
    %2191 = vmatprep.subr.bf16.mxu0 %v2118
    %2192 = vmatpush1.bf16.msra.mxu0 %v2117
    %2193 = vmatprep.subr.bf16.mxu0 %v2123
    %2194 = vmatpush1.bf16.msra.mxu0 %v2122
    %2195 = vmatprep.subr.bf16.mxu0 %v2128
    %2196 = vmatpush1.bf16.msra.mxu0 %v2127
    %2197 = vmatprep.subr.bf16.mxu0 %v2133
    %2198 = vmatpush1.bf16.msra.mxu0 %v2132
    %2199 = vmatprep.subr.bf16.mxu0 %v2138
    %2200 = vmatpush1.bf16.msra.mxu0 %v2137
    %2201 = vmatprep.subr.bf16.mxu0 %v2143
    %2202 = vmatpush1.bf16.msra.mxu0 %v2142
    %2203 = vmatprep.subr.bf16.mxu0 0
    %2204 = vmatpush1.bf16.msra.mxu0 0
    %2205 = vmatprep.subr.bf16.mxu0 0
    %2206 = vmatpush1.bf16.msra.mxu0 0
    %2207 = vmatprep.subr.bf16.mxu0 0
    %2208 = vmatpush1.bf16.msra.mxu0 0
    %2209 = vmatprep.subr.bf16.mxu0 0
    %2210 = vmatpush1.bf16.msra.mxu0 0
    %2211 = vmatprep.subr.bf16.mxu0 0
    %2212 = vmatpush1.bf16.msra.mxu0 0
    %2213 = vmatprep.subr.bf16.mxu0 0
    %2214 = vmatpush1.bf16.msra.mxu0 0
    %2215 = vmatprep.subr.bf16.mxu0 0
    %2216 = vmatpush1.bf16.msra.mxu0 0
    %2217 = vmatprep.subr.bf16.mxu0 0
    %2218 = vmatpush1.bf16.msra.mxu0 0
    %2219 = vmatprep.mubr.bf16.mxu0 0
    %2220 = vmatmul.mubr.bf16.gmra.mrb[0].mxu0 %v1901
    %v2221 = vpop.f32.mrb[0].mxu0
    %v2222 = vadd.f32 %v1957, %v2221
    %v2223 = vpop.f32.mrb[0].mxu0
    %v2224 = vadd.f32 %v1961, %v2223
    %v2225 = vpop.f32.mrb[0].mxu0
    %v2226 = vadd.f32 %v1957, %v2225
    %v2227 = vpop.f32.mrb[0].mxu0
    %v2228 = vadd.f32 %v1961, %v2227
    %2229 = vdwg.mxu0
    %2230 = vmatprep.subr.bf16.mxu0 %v2110
    %2231 = vmatpush1.bf16.msra.mxu0 %v2109
    %2232 = vmatprep.subr.bf16.mxu0 %v2115
    %2233 = vmatpush1.bf16.msra.mxu0 %v2114
    %2234 = vmatprep.subr.bf16.mxu0 %v2120
    %2235 = vmatpush1.bf16.msra.mxu0 %v2119
    %2236 = vmatprep.subr.bf16.mxu0 %v2125
    %2237 = vmatpush1.bf16.msra.mxu0 %v2124
    %2238 = vmatprep.subr.bf16.mxu0 %v2130
    %2239 = vmatpush1.bf16.msra.mxu0 %v2129
    %2240 = vmatprep.subr.bf16.mxu0 %v2135
    %2241 = vmatpush1.bf16.msra.mxu0 %v2134
    %2242 = vmatprep.subr.bf16.mxu0 %v2140
    %2243 = vmatpush1.bf16.msra.mxu0 %v2139
    %2244 = vmatprep.subr.bf16.mxu0 %v2145
    %2245 = vmatpush1.bf16.msra.mxu0 %v2144
    %2246 = vmatprep.subr.bf16.mxu0 0
    %2247 = vmatpush1.bf16.msra.mxu0 0
    %2248 = vmatprep.subr.bf16.mxu0 0
    %2249 = vmatpush1.bf16.msra.mxu0 0
    %2250 = vmatprep.subr.bf16.mxu0 0
    %2251 = vmatpush1.bf16.msra.mxu0 0
    %2252 = vmatprep.subr.bf16.mxu0 0
    %2253 = vmatpush1.bf16.msra.mxu0 0
    %2254 = vmatprep.subr.bf16.mxu0 0
    %2255 = vmatpush1.bf16.msra.mxu0 0
    %2256 = vmatprep.subr.bf16.mxu0 0
    %2257 = vmatpush1.bf16.msra.mxu0 0
    %2258 = vmatprep.subr.bf16.mxu0 0
    %2259 = vmatpush1.bf16.msra.mxu0 0
    %2260 = vmatprep.subr.bf16.mxu0 0
    %2261 = vmatpush1.bf16.msra.mxu0 0
    %2262 = vmatprep.mubr.bf16.mxu0 0
    %2263 = vmatmul.mubr.bf16.gmra.mrb[0].mxu0 %v1901
    %v2264 = vpop.f32.mrb[0].mxu0
    %v2265 = vadd.f32 %v1965, %v2264
    %v2266 = vpop.f32.mrb[0].mxu0
    %v2267 = vadd.f32 %v1969, %v2266
    %v2268 = vpop.f32.mrb[0].mxu0
    %v2269 = vadd.f32 %v1965, %v2268
    %v2270 = vpop.f32.mrb[0].mxu0
    %v2271 = vadd.f32 %v1969, %v2270
    %2272 = vdwg.mxu0
    %2273 = vmatprep.subr.bf16.mxu0 0
    %2274 = vmatpush1.bf16.msra.mxu0 %v2111
    %2275 = vmatprep.subr.bf16.mxu0 0
    %2276 = vmatpush1.bf16.msra.mxu0 %v2116
    %2277 = vmatprep.subr.bf16.mxu0 0
    %2278 = vmatpush1.bf16.msra.mxu0 %v2121
    %2279 = vmatprep.subr.bf16.mxu0 0
    %2280 = vmatpush1.bf16.msra.mxu0 %v2126
    %2281 = vmatprep.subr.bf16.mxu0 0
    %2282 = vmatpush1.bf16.msra.mxu0 %v2131
    %2283 = vmatprep.subr.bf16.mxu0 0
    %2284 = vmatpush1.bf16.msra.mxu0 %v2136
    %2285 = vmatprep.subr.bf16.mxu0 0
    %2286 = vmatpush1.bf16.msra.mxu0 %v2141
    %2287 = vmatprep.subr.bf16.mxu0 0
    %2288 = vmatpush1.bf16.msra.mxu0 %v2146
    %2289 = vmatprep.subr.bf16.mxu0 0
    %2290 = vmatpush1.bf16.msra.mxu0 0
    %2291 = vmatprep.subr.bf16.mxu0 0
    %2292 = vmatpush1.bf16.msra.mxu0 0
    %2293 = vmatprep.subr.bf16.mxu0 0
    %2294 = vmatpush1.bf16.msra.mxu0 0
    %2295 = vmatprep.subr.bf16.mxu0 0
    %2296 = vmatpush1.bf16.msra.mxu0 0
    %2297 = vmatprep.subr.bf16.mxu0 0
    %2298 = vmatpush1.bf16.msra.mxu0 0
    %2299 = vmatprep.subr.bf16.mxu0 0
    %2300 = vmatpush1.bf16.msra.mxu0 0
    %2301 = vmatprep.subr.bf16.mxu0 0
    %2302 = vmatpush1.bf16.msra.mxu0 0
    %2303 = vmatprep.subr.bf16.mxu0 0
    %2304 = vmatpush1.bf16.msra.mxu0 0
    %2305 = vmatprep.mubr.bf16.mxu0 0
    %2306 = vmatmul.mubr.bf16.gmra.mrb[0].mxu0 %v1901
    %v2307 = vpop.f32.mrb[0].mxu0
    %v2308 = vadd.f32 %v1973, %v2307
    %v2309 = vpop.f32.mrb[0].mxu0
    %v2310 = vpop.f32.mrb[0].mxu0
    %v2311 = vadd.f32 %v1973, %v2310
    %v2312 = vpop.f32.mrb[0].mxu0
    %2313 = vdwg.mxu0
    %v2314 = vmax.f32 %v2222, 0.0
    %v2315 = vmax.f32 %v2224, 0.0
    %v2316 = vmax.f32 %v2265, 0.0
    %v2317 = vmax.f32 %v2267, 0.0
    %v2318 = vmax.f32 %v2226, 0.0
    %v2319 = vmax.f32 %v2228, 0.0
    %v2320 = vmax.f32 %v2269, 0.0
    %v2321 = vmax.f32 %v2271, 0.0
    %2322 = vmax.xlane.f32.xlu0 %v2308
    %v2323 = vpop.xlane.xlu0 %2322
    %2324 = vmax.xlane.f32.xlu0 %v2311
    %v2325 = vpop.xlane.xlu0 %2324
    %v2326 = vsub.f32 %v2308, %v2323
    %v2327 = vsub.f32 %v2311, %v2325
    %v2328 = vmul.f32 %v2326, 1.442695
    %v2329 = vpow.pop %v2328
    %v2330 = vmul.f32 %v2327, 1.442695
    %v2331 = vpow.pop %v2330
    %2332 = vadd.xlane.f32.xlu0 %v2329
    %v2333 = vpop.xlane.xlu0 %2332
    %2334 = vadd.xlane.f32.xlu0 %v2331
    %v2335 = vpop.xlane.xlu0 %2334
    %v2336 = vrcp.pop %v2333
    %v2337 = vmul.f32 %v2329, %v2336
    %v2338 = vrcp.pop %v2335
    %v2339 = vmul.f32 %v2331, %v2338
    %2341 = vset.pattern.permute.xlu0 0
    %2342 = vperm.xlu0 %2341, %v2337
    %v2343 = vpop.permute.xlu0 %2342
    %2346 = vset.pattern.permute.xlu0 0
    %2347 = vperm.xlu0 %2346, %v2339
    %v2348 = vpop.permute.xlu0 %2347
    %v2350 = vmul.f32 %v2343, %v2314
    %v2351 = vmul.f32 %v2348, %v2318
    %2352 = vset.pattern.permute.xlu0 1
    %2353 = vperm.xlu0 %2352, %v2337
    %v2354 = vpop.permute.xlu0 %2353
    %2356 = vset.pattern.permute.xlu0 1
    %2357 = vperm.xlu0 %2356, %v2339
    %v2358 = vpop.permute.xlu0 %2357
    %v2360 = vmul.f32 %v2354, %v2315
    %v2361 = vmul.f32 %v2358, %v2319
    %v2362 = vadd.f32 %v2350, %v2360
    %v2363 = vadd.f32 %v2351, %v2361
    %2364 = vset.pattern.permute.xlu0 2
    %2365 = vperm.xlu0 %2364, %v2337
    %v2366 = vpop.permute.xlu0 %2365
    %2368 = vset.pattern.permute.xlu0 2
    %2369 = vperm.xlu0 %2368, %v2339
    %v2370 = vpop.permute.xlu0 %2369
    %v2372 = vmul.f32 %v2366, %v2316
    %v2373 = vmul.f32 %v2370, %v2320
    %v2374 = vadd.f32 %v2362, %v2372
    %v2375 = vadd.f32 %v2363, %v2373
    %2376 = vset.pattern.permute.xlu0 3
    %2377 = vperm.xlu0 %2376, %v2337
    %v2378 = vpop.permute.xlu0 %2377
    %2380 = vset.pattern.permute.xlu0 3
    %2381 = vperm.xlu0 %2380, %v2339
    %v2382 = vpop.permute.xlu0 %2381
    %v2384 = vmul.f32 %v2378, %v2317
    %v2385 = vmul.f32 %v2382, %v2321
    %v2386 = vadd.f32 %v2374, %v2384
    %v2387 = vadd.f32 %v2375, %v2385
    %v2388 = vld [vmem:[%s10] sm:$0x3]
    %v2389 = vlaneseq
    %v2390 = vshrl.u32 %v2389, 7
    %v2391 = vsub.s32 0, %v2390
    %v2392 = vrot.slane %v2388, %v2391
    %2394 = vbcast.lane.b32.xlu0 %v2392, 256
    %v2395 = vpop.permute.xlu0 %2394
    %v2396 = vlaneseq
    %v2397 = vshrl.u32 %v2396, 7
    %v2398 = vsub.s32 1, %v2397
    %v2399 = vrot.slane %v2388, %v2398
    %2401 = vbcast.lane.b32.xlu0 %v2399, 256
    %v2402 = vpop.permute.xlu0 %2401
    %v2403 = vmul.f32 %v2386, %v2395
    %v2404 = vmul.f32 %v2387, %v2402
    %v2405 = vrot.slane %v2403, 4
    %v2406 = vadd.f32 %v2403, %v2405
    %v2407 = vrot.slane %v2406, 2
    %v2408 = vadd.f32 %v2406, %v2407
    %v2409 = vrot.slane %v2408, 1
    %v2410 = vadd.f32 %v2408, %v2409
    %v2411 = vrot.slane %v2404, 4
    %v2412 = vadd.f32 %v2404, %v2411
    %v2413 = vrot.slane %v2412, 2
    %v2414 = vadd.f32 %v2412, %v2413
    %v2415 = vrot.slane %v2414, 1
    %v2416 = vadd.f32 %v2414, %v2415
    %v2417 = vrot.slane %v2395, 4
    %v2418 = vadd.f32 %v2395, %v2417
    %v2419 = vrot.slane %v2418, 2
    %v2420 = vadd.f32 %v2418, %v2419
    %v2421 = vrot.slane %v2420, 1
    %v2422 = vadd.f32 %v2420, %v2421
    %v2423 = vrot.slane %v2402, 4
    %v2424 = vadd.f32 %v2402, %v2423
    %v2425 = vrot.slane %v2424, 2
    %v2426 = vadd.f32 %v2424, %v2425
    %v2427 = vrot.slane %v2426, 1
    %v2428 = vadd.f32 %v2426, %v2427
    %v2429 = vmax.f32 %v2422, 1.0
    %v2430 = vmax.f32 %v2428, 1.0
    %v2431 = vrcp.pop %v2429
    %v2432 = vmul.f32 %v2410, %v2431
    %v2433 = vrcp.pop %v2430
    %v2434 = vmul.f32 %v2416, %v2433
    %v2435 = vpack.c.bf16 %v2432, %v2432
    %v2436 = vpack.c.bf16 %v2434, %v2434
    %v2437 = vld [vmem:[%s13] sm:$0xf]
    %v2438 = vld [vmem:[%s13 + $0x4] sm:$0xf]
    %v2439 = vld [vmem:[%s13 + $0x8] sm:$0xf]
    %v2440 = vld [vmem:[%s13 + $0xc] sm:$0xf]
    %v2441 = vld [vmem:[%s13 + $0x10] sm:$0xf]
    %v2442 = vld [vmem:[%s13 + $0x14] sm:$0xf]
    %v2443 = vld [vmem:[%s13 + $0x18] sm:$0xf]
    %v2444 = vld [vmem:[%s13 + $0x1c] sm:$0xf]
    %v2445 = vld [vmem:[%s13 + $0x20] sm:$0xf]
    %v2446 = vld [vmem:[%s13 + $0x24] sm:$0xf]
    %v2447 = vld [vmem:[%s13 + $0x28] sm:$0xf]
    %v2448 = vld [vmem:[%s13 + $0x2c] sm:$0xf]
    %v2449 = vld [vmem:[%s13 + $0x30] sm:$0xf]
    %v2450 = vld [vmem:[%s13 + $0x34] sm:$0xf]
    %v2451 = vld [vmem:[%s13 + $0x38] sm:$0xf]
    %v2452 = vld [vmem:[%s13 + $0x3c] sm:$0xf]
    %v2453 = vld [vmem:[%s14] sm:$0x1]
    %v2455 = vlaneseq
    %v2456 = vshrl.u32 %v2455, 7
    %v2457 = vsub.s32 0, %v2456
    %v2458 = vrot.slane %v2453, %v2457
    %v2462 = vunpack.c.l.b16 %v2435
    %v2463 = vunpack.c.l.b16 %v2436
    %v2464 = vsel %vm1168, %v2463, %v2462
    %v2465 = vpack.c.b16 %v2464, %v2464
    %v2483 = vunpack.c.l.b16 %v2437
    %v2484 = vunpack.c.l.b16 %v2438
    %v2485 = vunpack.c.l.b16 %v2439
    %v2486 = vunpack.c.l.b16 %v2440
    %v2487 = vunpack.c.l.b16 %v2441
    %v2488 = vunpack.c.l.b16 %v2442
    %v2489 = vunpack.c.l.b16 %v2443
    %v2490 = vunpack.c.l.b16 %v2444
    %v2491 = vunpack.c.l.b16 %v2445
    %v2492 = vunpack.c.l.b16 %v2446
    %v2493 = vunpack.c.l.b16 %v2447
    %v2494 = vunpack.c.l.b16 %v2448
    %v2495 = vunpack.c.l.b16 %v2449
    %v2496 = vunpack.c.l.b16 %v2450
    %v2497 = vunpack.c.l.b16 %v2451
    %v2498 = vunpack.c.l.b16 %v2452
    %v2499 = vpack.c.b16 %v2484, %v2483
    %v2500 = vpack.c.b16 %v2486, %v2485
    %v2501 = vpack.c.b16 %v2488, %v2487
    %v2502 = vpack.c.b16 %v2490, %v2489
    %v2503 = vpack.c.b16 %v2492, %v2491
    %v2504 = vpack.c.b16 %v2494, %v2493
    %v2505 = vpack.c.b16 %v2496, %v2495
    %v2506 = vpack.c.b16 %v2498, %v2497
    %2515 = vmatprep.subr.bf16.mxu0 0
    %2516 = vmatpush1.bf16.msra.mxu0 %v2499
    %2517 = vmatprep.subr.bf16.mxu0 0
    %2518 = vmatpush1.bf16.msra.mxu0 %v2500
    %2519 = vmatprep.subr.bf16.mxu0 0
    %2520 = vmatpush1.bf16.msra.mxu0 %v2501
    %2521 = vmatprep.subr.bf16.mxu0 0
    %2522 = vmatpush1.bf16.msra.mxu0 %v2502
    %2523 = vmatprep.subr.bf16.mxu0 0
    %2524 = vmatpush1.bf16.msra.mxu0 %v2503
    %2525 = vmatprep.subr.bf16.mxu0 0
    %2526 = vmatpush1.bf16.msra.mxu0 %v2504
    %2527 = vmatprep.subr.bf16.mxu0 0
    %2528 = vmatpush1.bf16.msra.mxu0 %v2505
    %2529 = vmatprep.subr.bf16.mxu0 0
    %2530 = vmatpush1.bf16.msra.mxu0 %v2506
    %2531 = vmatprep.subr.bf16.mxu0 0
    %2532 = vmatpush1.bf16.msra.mxu0 0
    %2533 = vmatprep.subr.bf16.mxu0 0
    %2534 = vmatpush1.bf16.msra.mxu0 0
    %2535 = vmatprep.subr.bf16.mxu0 0
    %2536 = vmatpush1.bf16.msra.mxu0 0
    %2537 = vmatprep.subr.bf16.mxu0 0
    %2538 = vmatpush1.bf16.msra.mxu0 0
    %2539 = vmatprep.subr.bf16.mxu0 0
    %2540 = vmatpush1.bf16.msra.mxu0 0
    %2541 = vmatprep.subr.bf16.mxu0 0
    %2542 = vmatpush1.bf16.msra.mxu0 0
    %2543 = vmatprep.subr.bf16.mxu0 0
    %2544 = vmatpush1.bf16.msra.mxu0 0
    %2545 = vmatprep.subr.bf16.mxu0 0
    %2546 = vmatpush1.bf16.msra.mxu0 0
    %2547 = vmatprep.mubr.bf16.mxu0 0
    %2548 = vmatmul.mubr.bf16.gmra.mrb[0].mxu0 %v2465
    %v2549 = vpop.f32.mrb[0].mxu0
    %v2550 = vadd.f32 %v2458, %v2549
    %v2551 = vpop.f32.mrb[0].mxu0
    %v2552 = vpop.f32.mrb[0].mxu0
    %v2553 = vpop.f32.mrb[0].mxu0
    %2554 = vdwg.mxu0
    %v2555 = vpack.c.bf16 %v2550, %v2550
    %v2556 = vld [vmem:[%s15] sm:$0xf]
    %v2557 = vld [vmem:[%s15 + $0x4] sm:$0xf]
    %v2558 = vld [vmem:[%s15 + $0x8] sm:$0xf]
    %v2559 = vld [vmem:[%s15 + $0xc] sm:$0xf]
    %v2560 = vld [vmem:[%s15 + $0x10] sm:$0xf]
    %v2561 = vld [vmem:[%s15 + $0x14] sm:$0xf]
    %v2562 = vld [vmem:[%s15 + $0x18] sm:$0xf]
    %v2563 = vld [vmem:[%s15 + $0x1c] sm:$0xf]
    %v2564 = vld [vmem:[%s15 + $0x20] sm:$0xf]
    %v2565 = vld [vmem:[%s15 + $0x24] sm:$0xf]
    %v2566 = vld [vmem:[%s15 + $0x28] sm:$0xf]
    %v2567 = vld [vmem:[%s15 + $0x2c] sm:$0xf]
    %v2568 = vld [vmem:[%s15 + $0x30] sm:$0xf]
    %v2569 = vld [vmem:[%s15 + $0x34] sm:$0xf]
    %v2570 = vld [vmem:[%s15 + $0x38] sm:$0xf]
    %v2571 = vld [vmem:[%s15 + $0x3c] sm:$0xf]
    %v2572 = vld [vmem:[%s16] sm:$0x1]
    %v2574 = vlaneseq
    %v2575 = vshrl.u32 %v2574, 7
    %v2576 = vsub.s32 0, %v2575
    %v2577 = vrot.slane %v2572, %v2576
    %v2595 = vunpack.c.l.b16 %v2556
    %v2596 = vunpack.c.l.b16 %v2557
    %v2597 = vunpack.c.l.b16 %v2558
    %v2598 = vunpack.c.l.b16 %v2559
    %v2599 = vunpack.c.l.b16 %v2560
    %v2600 = vunpack.c.l.b16 %v2561
    %v2601 = vunpack.c.l.b16 %v2562
    %v2602 = vunpack.c.l.b16 %v2563
    %v2603 = vunpack.c.l.b16 %v2564
    %v2604 = vunpack.c.l.b16 %v2565
    %v2605 = vunpack.c.l.b16 %v2566
    %v2606 = vunpack.c.l.b16 %v2567
    %v2607 = vunpack.c.l.b16 %v2568
    %v2608 = vunpack.c.l.b16 %v2569
    %v2609 = vunpack.c.l.b16 %v2570
    %v2610 = vunpack.c.l.b16 %v2571
    %v2611 = vpack.c.b16 %v2596, %v2595
    %v2612 = vpack.c.b16 %v2598, %v2597
    %v2613 = vpack.c.b16 %v2600, %v2599
    %v2614 = vpack.c.b16 %v2602, %v2601
    %v2615 = vpack.c.b16 %v2604, %v2603
    %v2616 = vpack.c.b16 %v2606, %v2605
    %v2617 = vpack.c.b16 %v2608, %v2607
    %v2618 = vpack.c.b16 %v2610, %v2609
    %2627 = vmatprep.subr.bf16.mxu0 0
    %2628 = vmatpush1.bf16.msra.mxu0 %v2611
    %2629 = vmatprep.subr.bf16.mxu0 0
    %2630 = vmatpush1.bf16.msra.mxu0 %v2612
    %2631 = vmatprep.subr.bf16.mxu0 0
    %2632 = vmatpush1.bf16.msra.mxu0 %v2613
    %2633 = vmatprep.subr.bf16.mxu0 0
    %2634 = vmatpush1.bf16.msra.mxu0 %v2614
    %2635 = vmatprep.subr.bf16.mxu0 0
    %2636 = vmatpush1.bf16.msra.mxu0 %v2615
    %2637 = vmatprep.subr.bf16.mxu0 0
    %2638 = vmatpush1.bf16.msra.mxu0 %v2616
    %2639 = vmatprep.subr.bf16.mxu0 0
    %2640 = vmatpush1.bf16.msra.mxu0 %v2617
    %2641 = vmatprep.subr.bf16.mxu0 0
    %2642 = vmatpush1.bf16.msra.mxu0 %v2618
    %2643 = vmatprep.subr.bf16.mxu0 0
    %2644 = vmatpush1.bf16.msra.mxu0 0
    %2645 = vmatprep.subr.bf16.mxu0 0
    %2646 = vmatpush1.bf16.msra.mxu0 0
    %2647 = vmatprep.subr.bf16.mxu0 0
    %2648 = vmatpush1.bf16.msra.mxu0 0
    %2649 = vmatprep.subr.bf16.mxu0 0
    %2650 = vmatpush1.bf16.msra.mxu0 0
    %2651 = vmatprep.subr.bf16.mxu0 0
    %2652 = vmatpush1.bf16.msra.mxu0 0
    %2653 = vmatprep.subr.bf16.mxu0 0
    %2654 = vmatpush1.bf16.msra.mxu0 0
    %2655 = vmatprep.subr.bf16.mxu0 0
    %2656 = vmatpush1.bf16.msra.mxu0 0
    %2657 = vmatprep.subr.bf16.mxu0 0
    %2658 = vmatpush1.bf16.msra.mxu0 0
    %2659 = vmatprep.mubr.bf16.mxu0 0
    %2660 = vmatmul.mubr.bf16.gmra.mrb[0].mxu0 %v2555
    %v2661 = vpop.f32.mrb[0].mxu0
    %v2662 = vadd.f32 %v2577, %v2661
    %v2663 = vpop.f32.mrb[0].mxu0
    %v2664 = vpop.f32.mrb[0].mxu0
    %v2665 = vpop.f32.mrb[0].mxu0
    %2666 = vdwg.mxu0
    %2667 = vst [vmem:[#allocation6] sm:$0x3] %v2550
    %2668 = vst [vmem:[#allocation9] sm:$0x3] %v2662
    // Predicated region
    $region74: #{dual_tower_forward.1} parent=1 // pred_check
      _
    $region75: #{dual_tower_forward.1} parent=1 // pred_check_branch
      %2670 = sbr.rel (0) target = $region77
    $region76: #{dual_tower_forward.1} parent=1 // pred_region
      %s2672 = ssub.s32 32, 32
      %2673 = vsyncadd [#allocation4], %s2672
      %s2675 = sshll.u32 [#allocation5], 4
      %s2676 = int_to_ptr.vmem [resolvable:$true] %s2675
      %2678 = dma.vmem_to_hbm [thread:$0]  %s2676, 32, %s17, [#allocation4]
    $region77: #{dual_tower_forward.1} parent=1 // pred_fallthru
      _
    // Predicated region
    $region78: #{dual_tower_forward.1} parent=1 // pred_check
      _
    $region79: #{dual_tower_forward.1} parent=1 // pred_check_branch
      %2680 = sbr.rel (0) target = $region81
    $region80: #{dual_tower_forward.1} parent=1 // pred_region
      %s2682 = ssub.s32 32, 32
      %2683 = vsyncadd [#allocation7], %s2682
      %s2685 = sshll.u32 [#allocation6], 4
      %s2686 = int_to_ptr.vmem [resolvable:$true] %s2685
      %2688 = dma.vmem_to_hbm [thread:$0]  %s2686, 32, %s18, [#allocation7]
    $region81: #{dual_tower_forward.1} parent=1 // pred_fallthru
      _
    // Predicated region
    $region82: #{dual_tower_forward.1} parent=1 // pred_check
      _
    $region83: #{dual_tower_forward.1} parent=1 // pred_check_branch
      %2690 = sbr.rel (0) target = $region85
    $region84: #{dual_tower_forward.1} parent=1 // pred_region
      %s2692 = ssub.s32 32, 32
      %2693 = vsyncadd [#allocation7], %s2692
      %s2695 = sshll.u32 [#allocation8], 4
      %s2696 = int_to_ptr.vmem [resolvable:$true] %s2695
      %2698 = dma.vmem_to_hbm [thread:$0]  %s2696, 32, %s19, [#allocation7]
    $region85: #{dual_tower_forward.1} parent=1 // pred_fallthru
      _
    // Predicated region
    $region86: #{dual_tower_forward.1} parent=1 // pred_check
      _
    $region87: #{dual_tower_forward.1} parent=1 // pred_check_branch
      %2700 = sbr.rel (0) target = $region89
    $region88: #{dual_tower_forward.1} parent=1 // pred_region
      %s2702 = ssub.s32 32, 32
      %2703 = vsyncadd [#allocation10], %s2702
      %s2705 = sshll.u32 [#allocation9], 4
      %s2706 = int_to_ptr.vmem [resolvable:$true] %s2705
      %2708 = dma.vmem_to_hbm [thread:$0]  %s2706, 32, %s20, [#allocation10]
    $region89: #{dual_tower_forward.1} parent=1 // pred_fallthru
      _
    // Predicated region
    $region90: #{dual_tower_forward.1} parent=1 // pred_check
      _
    $region91: #{dual_tower_forward.1} parent=1 // pred_check_branch
      %2710 = sbr.rel (0) target = $region93
    $region92: #{dual_tower_forward.1} parent=1 // pred_region
      _
    $region93: #{dual_tower_forward.1} parent=1 // pred_fallthru
      _
    // Predicated region
    $region94: #{dual_tower_forward.1} parent=1 // pred_check
      _
    $region95: #{dual_tower_forward.1} parent=1 // pred_check_branch
      %2712 = sbr.rel (0) target = $region97
    $region96: #{dual_tower_forward.1} parent=1 // pred_region
      _
    $region97: #{dual_tower_forward.1} parent=1 // pred_fallthru
      _
    // Predicated region
    $region98: #{dual_tower_forward.1} parent=1 // pred_check
      _
    $region99: #{dual_tower_forward.1} parent=1 // pred_check_branch
      %2714 = sbr.rel (0) target = $region101
    $region100: #{dual_tower_forward.1} parent=1 // pred_region
      %2715 = dma.done [#allocation4], 32
    $region101: #{dual_tower_forward.1} parent=1 // pred_fallthru
      _
    // Predicated region
    $region102: #{dual_tower_forward.1} parent=1 // pred_check
      _
    $region103: #{dual_tower_forward.1} parent=1 // pred_check_branch
      %2717 = sbr.rel (0) target = $region105
    $region104: #{dual_tower_forward.1} parent=1 // pred_region
      %2718 = dma.done [#allocation7], 32
    $region105: #{dual_tower_forward.1} parent=1 // pred_fallthru
      _
    // Predicated region
    $region106: #{dual_tower_forward.1} parent=1 // pred_check
      _
    $region107: #{dual_tower_forward.1} parent=1 // pred_check_branch
      %2720 = sbr.rel (0) target = $region109
    $region108: #{dual_tower_forward.1} parent=1 // pred_region
      %2721 = dma.done [#allocation7], 32
    $region109: #{dual_tower_forward.1} parent=1 // pred_fallthru
      _
    // Predicated region
    $region110: #{dual_tower_forward.1} parent=1 // pred_check
      _
    $region111: #{dual_tower_forward.1} parent=1 // pred_check_branch
      %2723 = sbr.rel (0) target = $region113
    $region112: #{dual_tower_forward.1} parent=1 // pred_region
      %2724 = dma.done [#allocation10], 32
    $region113: #{dual_tower_forward.1} parent=1 // pred_fallthru
      _
    // Predicated region
    $region114: #{dual_tower_forward.1} parent=1 // pred_check
      _
    $region115: #{dual_tower_forward.1} parent=1 // pred_check_branch
      %2726 = sbr.rel (0) target = $region117
    $region116: #{dual_tower_forward.1} parent=1 // pred_region
      _
    $region117: #{dual_tower_forward.1} parent=1 // pred_fallthru
      _
    // Predicated region
    $region118: #{dual_tower_forward.1} parent=1 // pred_check
      _
    $region119: #{dual_tower_forward.1} parent=1 // pred_check_branch
      %2728 = sbr.rel (0) target = $region121
    $region120: #{dual_tower_forward.1} parent=1 // pred_region
      _
    $region121: #{dual_tower_forward.1} parent=1 // pred_fallthru
      _
    %2729 = vsyncpa [#allocation3], 1
    %2730 = vsyncpa [#allocation4], 1
    %2731 = vsyncpa [#allocation7], 1
    %2732 = vsyncpa [#allocation10], 1

</llo_original>
